<compile_context>
chip_gen: v5e
topology: v5e:2x2
jax: 0.10.0
libtpu: 0.0.40
codegen_flags: <defaults>
</compile_context>

<pallas_src>
import functools
import math

import jax
import jax.numpy as jnp
from jax.experimental import pallas as pl
from jax.experimental.pallas import tpu as pltpu


def _layer_norm(y, gamma, beta, eps=1e-5):
    mu = jnp.mean(y, axis=-1, keepdims=True)
    var = jnp.mean((y - mu) ** 2, axis=-1, keepdims=True)
    return (y - mu) * jax.lax.rsqrt(var + eps) * gamma + beta


def encoder_stack_kernel(x_ref, bias_ref,
                         wqkv_ref, bqkv_ref, wo_ref, bo_ref,
                         g1_ref, beta1_ref,
                         w1_ref, b1_ref, w2_ref, b2_ref,
                         g2_ref, beta2_ref,
                         out_ref,
                         *, nhead):
    layer = pl.program_id(1)

    # Layer 0: seed the resident activation (output block) with the input.
    @pl.when(layer == 0)
    def _():
        out_ref[0] = x_ref[0]

    x = out_ref[0]                      # (L, D) f32, resident across layer axis
    L, D = x.shape
    dk = D // nhead

    # --- Fused QKV projection (bf16 operands, f32 accumulation) ---
    xb = x.astype(jnp.bfloat16)
    qkv = jnp.dot(xb, wqkv_ref[0],
                  preferred_element_type=jnp.float32) + bqkv_ref[0]   # (L, 3D)
    qkv_b = qkv.astype(jnp.bfloat16)    # single cast, then static lane slices
    q = qkv_b[:, :D].reshape(L, nhead, dk)
    k = qkv_b[:, D:2 * D].reshape(L, nhead, dk)
    v = qkv_b[:, 2 * D:].reshape(L, nhead, dk)

    # --- Batched multi-head attention (H is a batch dim; no per-head loop) ---
    # 1/sqrt(dk) is already folded into the Q projection weights.
    s = jnp.einsum('qhd,khd->hqk', q, k,
                   preferred_element_type=jnp.float32)                # (H, L, L)
    s = s + bias_ref[0]                 # additive key-padding mask, bcast h/q

    m = jnp.max(s, axis=-1, keepdims=True)
    e = jnp.exp(s - m)
    p = e * pl.reciprocal(jnp.sum(e, axis=-1, keepdims=True), approx=True)

    ctx = jnp.einsum('hqk,khd->hqd', p.astype(jnp.bfloat16), v,
                     preferred_element_type=jnp.float32)              # (H, L, dk)
    ctx = ctx.transpose(1, 0, 2).reshape(L, D)                        # (L, D)

    attn_out = jnp.dot(ctx.astype(jnp.bfloat16), wo_ref[0],
                       preferred_element_type=jnp.float32) + bo_ref[0]

    # TODO(synk): dropout layers (attn / dropout1 / FFN / dropout2) are identity
    # here (eval/inference semantics).

    # --- residual + LayerNorm 1 (f32) ---
    y = _layer_norm(x + attn_out, g1_ref[0], beta1_ref[0])

    # --- FeedForward: Linear -> ReLU -> Linear ---
    hdn = jnp.dot(y.astype(jnp.bfloat16), w1_ref[0],
                  preferred_element_type=jnp.float32) + b1_ref[0]
    hdn = jnp.maximum(hdn, 0.0)
    ff = jnp.dot(hdn.astype(jnp.bfloat16), w2_ref[0],
                 preferred_element_type=jnp.float32) + b2_ref[0]

    # --- residual + LayerNorm 2 (f32) ---
    z = _layer_norm(y + ff, g2_ref[0], beta2_ref[0])

    out_ref[0] = z.astype(out_ref.dtype)


def transformer_encoder(x, src_mask, layer_params, nhead):
    """x: (B, L, D) f32; src_mask: (B, L) with 1 = valid, 0 = padded."""
    B, L, D = x.shape
    NL = len(layer_params)
    dk = D // nhead
    scale = 1.0 / math.sqrt(dk)

    # Stack per-layer params along a leading layer axis; fuse QKV and fold the
    # attention scale into the Q projection; cast matmul weights to bf16.
    def stack(name, dtype=None):
        a = jnp.stack([p[name] for p in layer_params], axis=0)
        return a.astype(dtype) if dtype is not None else a

    wqkv = jnp.stack(
        [jnp.concatenate([p['wq'] * scale, p['wk'], p['wv']], axis=1)
         for p in layer_params], axis=0).astype(jnp.bfloat16)          # (NL, D, 3D)
    bqkv = jnp.stack(
        [jnp.concatenate([p['bq'] * scale, p['bk'], p['bv']], axis=1)
         for p in layer_params], axis=0)                                # (NL, 1, 3D)
    wo, bo = stack('wo', jnp.bfloat16), stack('bo')
    g1, beta1 = stack('g1'), stack('beta1')
    w1, b1 = stack('w1', jnp.bfloat16), stack('b1')
    w2, b2 = stack('w2', jnp.bfloat16), stack('b2')
    g2, beta2 = stack('g2'), stack('beta2')

    # Additive key-padding bias: 0 for keep, -1e9 for masked key positions.
    bias = ((src_mask.astype(jnp.float32) - 1.0) * 1e9).reshape(B, 1, L)

    weights = [wqkv, bqkv, wo, bo, g1, beta1, w1, b1, w2, b2, g2, beta2]

    def w_spec(a):
        n_rest = a.ndim - 1
        return pl.BlockSpec((1,) + a.shape[1:],
                            lambda b, l, _n=n_rest: (l,) + (0,) * _n)

    in_specs = ([pl.BlockSpec((1, L, D), lambda b, l: (b, 0, 0)),
                 pl.BlockSpec((1, 1, L), lambda b, l: (b, 0, 0))]
                + [w_spec(w) for w in weights])

    return pl.pallas_call(
        functools.partial(encoder_stack_kernel, nhead=nhead),
        out_shape=jax.ShapeDtypeStruct((B, L, D), x.dtype),
        grid=(B, NL),
        in_specs=in_specs,
        out_specs=pl.BlockSpec((1, L, D), lambda b, l: (b, 0, 0)),
        compiler_params=pltpu.CompilerParams(
            dimension_semantics=("parallel", "arbitrary")),
    )(x, bias, *weights)


def init_layer_params(key, d_model, d_ff):
    """PyTorch-style init: Linear ~ U(-1/sqrt(fan_in), 1/sqrt(fan_in))."""
    keys = jax.random.split(key, 12)

    def linear(kw, kb, fan_in, fan_out):
        bound = 1.0 / math.sqrt(fan_in)
        w = jax.random.uniform(kw, (fan_in, fan_out), jnp.float32, -bound, bound)
        b = jax.random.uniform(kb, (1, fan_out), jnp.float32, -bound, bound)
        return w, b

    wq, bq = linear(keys[0], keys[1], d_model, d_model)
    wk, bk = linear(keys[2], keys[3], d_model, d_model)
    wv, bv = linear(keys[4], keys[5], d_model, d_model)
    wo, bo = linear(keys[6], keys[7], d_model, d_model)
    w1, b1 = linear(keys[8], keys[9], d_model, d_ff)
    w2, b2 = linear(keys[10], keys[11], d_ff, d_model)
    return dict(
        wq=wq, bq=bq, wk=wk, bk=bk, wv=wv, bv=bv, wo=wo, bo=bo,
        g1=jnp.ones((1, d_model), jnp.float32),
        beta1=jnp.zeros((1, d_model), jnp.float32),
        w1=w1, b1=b1, w2=w2, b2=b2,
        g2=jnp.ones((1, d_model), jnp.float32),
        beta2=jnp.zeros((1, d_model), jnp.float32),
    )


if __name__ == "__main__":
    # Small shapes consistent with the module's forward pass.
    B, L, D = 2, 8, 32
    NHEAD, D_FF, NUM_LAYERS = 4, 64, 2

    root = jax.random.PRNGKey(0)
    k_x, *k_layers = jax.random.split(root, 1 + NUM_LAYERS)

    x = jax.random.normal(k_x, (B, L, D), jnp.float32)
    # mask: batch 0 fully valid, batch 1 has two padded (masked) tail positions.
    src_mask = jnp.array(
        [[1] * L,
         [1] * (L - 2) + [0, 0]], dtype=jnp.float32)

    layer_params = [init_layer_params(k, D, D_FF) for k in k_layers]

    out = transformer_encoder(x, src_mask, layer_params, NHEAD)
    out = jax.block_until_ready(out)
    assert out.shape == (B, L, D)
    assert bool(jnp.all(jnp.isfinite(out)))
    print("KERNEL_OK")
</pallas_src>

<mosaic_0001>
module attributes {stable_mosaic.version = 11 : i64} {
  func.func @encoder_stack_kernel(%arg0: i32, %arg1: i32, %arg2: memref<1x8x32xf32, #tpu.memory_space<vmem>>, %arg3: memref<1x1x8xf32, #tpu.memory_space<vmem>>, %arg4: memref<1x32x96xbf16, #tpu.memory_space<vmem>>, %arg5: memref<1x1x96xf32, #tpu.memory_space<vmem>>, %arg6: memref<1x32x32xbf16, #tpu.memory_space<vmem>>, %arg7: memref<1x1x32xf32, #tpu.memory_space<vmem>>, %arg8: memref<1x1x32xf32, #tpu.memory_space<vmem>>, %arg9: memref<1x1x32xf32, #tpu.memory_space<vmem>>, %arg10: memref<1x32x64xbf16, #tpu.memory_space<vmem>>, %arg11: memref<1x1x64xf32, #tpu.memory_space<vmem>>, %arg12: memref<1x64x32xbf16, #tpu.memory_space<vmem>>, %arg13: memref<1x1x32xf32, #tpu.memory_space<vmem>>, %arg14: memref<1x1x32xf32, #tpu.memory_space<vmem>>, %arg15: memref<1x1x32xf32, #tpu.memory_space<vmem>>, %arg16: memref<1x8x32xf32, #tpu.memory_space<vmem>>) attributes {dimension_semantics = [#tpu.dimension_semantics<parallel>, #tpu.dimension_semantics<arbitrary>], iteration_bounds = array<i64: 2, 2>, scalar_prefetch = 0 : i64, scratch_operands = 0 : i64, tpu.core_type = #tpu.core_type<tc>, window_params = [{transform_indices = @transform_0, window_bounds = array<i64: 1, 8, 32>}, {transform_indices = @transform_1, window_bounds = array<i64: 1, 1, 8>}, {transform_indices = @transform_2, window_bounds = array<i64: 1, 32, 96>}, {transform_indices = @transform_3, window_bounds = array<i64: 1, 1, 96>}, {transform_indices = @transform_4, window_bounds = array<i64: 1, 32, 32>}, {transform_indices = @transform_5, window_bounds = array<i64: 1, 1, 32>}, {transform_indices = @transform_6, window_bounds = array<i64: 1, 1, 32>}, {transform_indices = @transform_7, window_bounds = array<i64: 1, 1, 32>}, {transform_indices = @transform_8, window_bounds = array<i64: 1, 32, 64>}, {transform_indices = @transform_9, window_bounds = array<i64: 1, 1, 64>}, {transform_indices = @transform_10, window_bounds = array<i64: 1, 64, 32>}, {transform_indices = @transform_11, window_bounds = array<i64: 1, 1, 32>}, {transform_indices = @transform_12, window_bounds = array<i64: 1, 1, 32>}, {transform_indices = @transform_13, window_bounds = array<i64: 1, 1, 32>}, {transform_indices = @transform_14, window_bounds = array<i64: 1, 8, 32>}]} {
    %c0_i32 = arith.constant 0 : i32
    %0 = arith.cmpi eq, %arg1, %c0_i32 : i32
    %1 = arith.extui %0 : i1 to i32
    %c0_i32_0 = arith.constant 0 : i32
    %2 = arith.cmpi ne, %1, %c0_i32_0 : i32
    scf.if %2 {
      %c0_63 = arith.constant 0 : index
      %c0_64 = arith.constant 0 : index
      %c0_65 = arith.constant 0 : index
      %123 = vector.load %arg2[%c0_63, %c0_64, %c0_65] : memref<1x8x32xf32, #tpu.memory_space<vmem>>, vector<1x8x32xf32>
      %124 = vector.shape_cast %123 : vector<1x8x32xf32> to vector<8x32xf32>
      %c0_66 = arith.constant 0 : index
      %c0_67 = arith.constant 0 : index
      %c0_68 = arith.constant 0 : index
      %125 = vector.load %arg16[%c0_66, %c0_67, %c0_68] : memref<1x8x32xf32, #tpu.memory_space<vmem>>, vector<1x8x32xf32>
      %126 = vector.shape_cast %125 : vector<1x8x32xf32> to vector<8x32xf32>
      %127 = vector.shape_cast %124 : vector<8x32xf32> to vector<1x8x32xf32>
      tpu.vector_store %arg16[%c0_66, %c0_67, %c0_68], %127 {strides = array<i32>} : memref<1x8x32xf32, #tpu.memory_space<vmem>>, vector<1x8x32xf32>,
    } else {
    }
    %c0 = arith.constant 0 : index
    %c0_1 = arith.constant 0 : index
    %c0_2 = arith.constant 0 : index
    %3 = vector.load %arg16[%c0, %c0_1, %c0_2] : memref<1x8x32xf32, #tpu.memory_space<vmem>>, vector<1x8x32xf32>
    %4 = vector.shape_cast %3 : vector<1x8x32xf32> to vector<8x32xf32>
    %5 = arith.truncf %4 : vector<8x32xf32> to vector<8x32xbf16>
    %c0_3 = arith.constant 0 : index
    %c0_4 = arith.constant 0 : index
    %c0_5 = arith.constant 0 : index
    %6 = vector.load %arg4[%c0_3, %c0_4, %c0_5] : memref<1x32x96xbf16, #tpu.memory_space<vmem>>, vector<1x32x96xbf16>
    %7 = vector.shape_cast %6 : vector<1x32x96xbf16> to vector<32x96xbf16>
    %cst = arith.constant dense<0.000000e+00> : vector<8x96xf32>
    %8 = tpu.matmul %5, %7, %cst {dimension_numbers = #tpu.dot_dimension_numbers<[1], [0], [0], [1], [0, 0, 1, 1], [], []>} : vector<8x32xbf16>, vector<32x96xbf16>, vector<8x96xf32> -> vector<8x96xf32>
    %c0_6 = arith.constant 0 : index
    %c0_7 = arith.constant 0 : index
    %c0_8 = arith.constant 0 : index
    %9 = vector.load %arg5[%c0_6, %c0_7, %c0_8] : memref<1x1x96xf32, #tpu.memory_space<vmem>>, vector<1x1x96xf32>
    %10 = vector.shape_cast %9 : vector<1x1x96xf32> to vector<1x96xf32>
    %11 = vector.broadcast %10 : vector<1x96xf32> to vector<8x96xf32>
    %12 = arith.addf %8, %11 : vector<8x96xf32>
    %13 = arith.truncf %12 : vector<8x96xf32> to vector<8x96xbf16>
    %14 = vector.extract_strided_slice %13 {offsets = [0, 0], sizes = [8, 32], strides = [1, 1]} : vector<8x96xbf16> to vector<8x32xbf16>
    %15 = vector.shape_cast %14 : vector<8x32xbf16> to vector<8x4x8xbf16>
    %16 = vector.extract_strided_slice %13 {offsets = [0, 32], sizes = [8, 32], strides = [1, 1]} : vector<8x96xbf16> to vector<8x32xbf16>
    %17 = vector.shape_cast %16 : vector<8x32xbf16> to vector<8x4x8xbf16>
    %18 = vector.extract_strided_slice %13 {offsets = [0, 64], sizes = [8, 32], strides = [1, 1]} : vector<8x96xbf16> to vector<8x32xbf16>
    %19 = vector.shape_cast %18 : vector<8x32xbf16> to vector<8x4x8xbf16>
    "tpu.trace_start"() <{level = 10 : i32, message = "qhd,khd->hqk"}> : () -> ()
    %cst_9 = arith.constant dense<0.000000e+00> : vector<4x8x8xf32>
    %20 = tpu.matmul %15, %17, %cst_9 {dimension_numbers = #tpu.dot_dimension_numbers<[2], [2], [0], [0], [0, 1, 0, 0, 1, 0], [1], [1]>} : vector<8x4x8xbf16>, vector<8x4x8xbf16>, vector<4x8x8xf32> -> vector<4x8x8xf32>
    "tpu.trace_stop"() : () -> ()
    %c0_10 = arith.constant 0 : index
    %c0_11 = arith.constant 0 : index
    %c0_12 = arith.constant 0 : index
    %21 = vector.load %arg3[%c0_10, %c0_11, %c0_12] : memref<1x1x8xf32, #tpu.memory_space<vmem>>, vector<1x1x8xf32>
    %22 = vector.shape_cast %21 : vector<1x1x8xf32> to vector<1x8xf32>
    %23 = vector.shape_cast %22 : vector<1x8xf32> to vector<1x1x8xf32>
    %24 = vector.broadcast %23 : vector<1x1x8xf32> to vector<4x8x8xf32>
    %25 = arith.addf %20, %24 : vector<4x8x8xf32>
    %cst_13 = arith.constant dense<0xFF800000> : vector<4x8xf32>
    %26 = vector.multi_reduction <maximumf>, %25, %cst_13 [2] : vector<4x8x8xf32> to vector<4x8xf32>
    %27 = vector.shape_cast %26 : vector<4x8xf32> to vector<4x8x1xf32>
    %28 = vector.broadcast %27 : vector<4x8x1xf32> to vector<4x8x8xf32>
    %29 = arith.subf %25, %28 : vector<4x8x8xf32>
    %30 = math.exp %29 : vector<4x8x8xf32>
    %cst_14 = arith.constant dense<0.000000e+00> : vector<4x8xf32>
    %31 = vector.multi_reduction <add>, %30, %cst_14 [2] : vector<4x8x8xf32> to vector<4x8xf32>
    %32 = vector.shape_cast %31 : vector<4x8xf32> to vector<4x8x1xf32>
    %33 = tpu.reciprocal %32 {approx = true} : vector<4x8x1xf32> -> vector<4x8x1xf32>
    %34 = vector.broadcast %33 : vector<4x8x1xf32> to vector<4x8x8xf32>
    %35 = arith.mulf %30, %34 : vector<4x8x8xf32>
    %36 = arith.truncf %35 : vector<4x8x8xf32> to vector<4x8x8xbf16>
    "tpu.trace_start"() <{level = 10 : i32, message = "hqk,khd->hqd"}> : () -> ()
    %cst_15 = arith.constant dense<0.000000e+00> : vector<4x8x8xf32>
    %37 = tpu.matmul %36, %19, %cst_15 {dimension_numbers = #tpu.dot_dimension_numbers<[2], [0], [1], [2], [0, 0, 0, 1, 1, 2], [0], [1]>} : vector<4x8x8xbf16>, vector<8x4x8xbf16>, vector<4x8x8xf32> -> vector<4x8x8xf32>
    "tpu.trace_stop"() : () -> ()
    %38 = tpu.transpose %37, [1, 0, 2] : vector<4x8x8xf32> -> vector<8x4x8xf32>
    %39 = vector.shape_cast %38 : vector<8x4x8xf32> to vector<8x32xf32>
    %40 = arith.truncf %39 : vector<8x32xf32> to vector<8x32xbf16>
    %c0_16 = arith.constant 0 : index
    %c0_17 = arith.constant 0 : index
    %c0_18 = arith.constant 0 : index
    %41 = vector.load %arg6[%c0_16, %c0_17, %c0_18] : memref<1x32x32xbf16, #tpu.memory_space<vmem>>, vector<1x32x32xbf16>
    %42 = vector.shape_cast %41 : vector<1x32x32xbf16> to vector<32x32xbf16>
    %cst_19 = arith.constant dense<0.000000e+00> : vector<8x32xf32>
    %43 = tpu.matmul %40, %42, %cst_19 {dimension_numbers = #tpu.dot_dimension_numbers<[1], [0], [0], [1], [0, 0, 1, 1], [], []>} : vector<8x32xbf16>, vector<32x32xbf16>, vector<8x32xf32> -> vector<8x32xf32>
    %c0_20 = arith.constant 0 : index
    %c0_21 = arith.constant 0 : index
    %c0_22 = arith.constant 0 : index
    %44 = vector.load %arg7[%c0_20, %c0_21, %c0_22] : memref<1x1x32xf32, #tpu.memory_space<vmem>>, vector<1x1x32xf32>
    %45 = vector.shape_cast %44 : vector<1x1x32xf32> to vector<1x32xf32>
    %46 = vector.broadcast %45 : vector<1x32xf32> to vector<8x32xf32>
    %47 = arith.addf %43, %46 : vector<8x32xf32>
    %48 = arith.addf %4, %47 : vector<8x32xf32>
    %c0_23 = arith.constant 0 : index
    %c0_24 = arith.constant 0 : index
    %c0_25 = arith.constant 0 : index
    %49 = vector.load %arg8[%c0_23, %c0_24, %c0_25] : memref<1x1x32xf32, #tpu.memory_space<vmem>>, vector<1x1x32xf32>
    %50 = vector.shape_cast %49 : vector<1x1x32xf32> to vector<1x32xf32>
    %c0_26 = arith.constant 0 : index
    %c0_27 = arith.constant 0 : index
    %c0_28 = arith.constant 0 : index
    %51 = vector.load %arg9[%c0_26, %c0_27, %c0_28] : memref<1x1x32xf32, #tpu.memory_space<vmem>>, vector<1x1x32xf32>
    %52 = vector.shape_cast %51 : vector<1x1x32xf32> to vector<1x32xf32>
    %cst_29 = arith.constant dense<0.000000e+00> : vector<8xf32>
    %53 = vector.multi_reduction <add>, %48, %cst_29 [1] : vector<8x32xf32> to vector<8xf32>
    %54 = vector.shape_cast %53 : vector<8xf32> to vector<8x1xf32>
    %cst_30 = arith.constant 3.200000e+01 : f32
    %55 = vector.broadcast %cst_30 : f32 to vector<8x1xf32>
    %56 = arith.divf %54, %55 : vector<8x1xf32>
    %57 = vector.broadcast %56 : vector<8x1xf32> to vector<8x32xf32>
    %58 = arith.subf %48, %57 : vector<8x32xf32>
    %59 = arith.mulf %58, %58 : vector<8x32xf32>
    %cst_31 = arith.constant dense<0.000000e+00> : vector<8xf32>
    %60 = vector.multi_reduction <add>, %59, %cst_31 [1] : vector<8x32xf32> to vector<8xf32>
    %61 = vector.shape_cast %60 : vector<8xf32> to vector<8x1xf32>
    %cst_32 = arith.constant 3.200000e+01 : f32
    %62 = vector.broadcast %cst_32 : f32 to vector<8x1xf32>
    %63 = arith.divf %61, %62 : vector<8x1xf32>
    %64 = vector.broadcast %56 : vector<8x1xf32> to vector<8x32xf32>
    %65 = arith.subf %48, %64 : vector<8x32xf32>
    %cst_33 = arith.constant 9.99999974E-6 : f32
    %66 = vector.broadcast %cst_33 : f32 to vector<8x1xf32>
    %67 = arith.addf %63, %66 : vector<8x1xf32>
    %68 = math.rsqrt %67 : vector<8x1xf32>
    %69 = vector.broadcast %68 : vector<8x1xf32> to vector<8x32xf32>
    %70 = arith.mulf %65, %69 : vector<8x32xf32>
    %71 = vector.broadcast %50 : vector<1x32xf32> to vector<8x32xf32>
    %72 = arith.mulf %70, %71 : vector<8x32xf32>
    %73 = vector.broadcast %52 : vector<1x32xf32> to vector<8x32xf32>
    %74 = arith.addf %72, %73 : vector<8x32xf32>
    %75 = arith.truncf %74 : vector<8x32xf32> to vector<8x32xbf16>
    %c0_34 = arith.constant 0 : index
    %c0_35 = arith.constant 0 : index
    %c0_36 = arith.constant 0 : index
    %76 = vector.load %arg10[%c0_34, %c0_35, %c0_36] : memref<1x32x64xbf16, #tpu.memory_space<vmem>>, vector<1x32x64xbf16>
    %77 = vector.shape_cast %76 : vector<1x32x64xbf16> to vector<32x64xbf16>
    %cst_37 = arith.constant dense<0.000000e+00> : vector<8x64xf32>
    %78 = tpu.matmul %75, %77, %cst_37 {dimension_numbers = #tpu.dot_dimension_numbers<[1], [0], [0], [1], [0, 0, 1, 1], [], []>} : vector<8x32xbf16>, vector<32x64xbf16>, vector<8x64xf32> -> vector<8x64xf32>
    %c0_38 = arith.constant 0 : index
    %c0_39 = arith.constant 0 : index
    %c0_40 = arith.constant 0 : index
    %79 = vector.load %arg11[%c0_38, %c0_39, %c0_40] : memref<1x1x64xf32, #tpu.memory_space<vmem>>, vector<1x1x64xf32>
    %80 = vector.shape_cast %79 : vector<1x1x64xf32> to vector<1x64xf32>
    %81 = vector.broadcast %80 : vector<1x64xf32> to vector<8x64xf32>
    %82 = arith.addf %78, %81 : vector<8x64xf32>
    %cst_41 = arith.constant 0.000000e+00 : f32
    %83 = vector.broadcast %cst_41 : f32 to vector<8x64xf32>
    %84 = arith.maximumf %82, %83 : vector<8x64xf32>
    %85 = arith.truncf %84 : vector<8x64xf32> to vector<8x64xbf16>
    %c0_42 = arith.constant 0 : index
    %c0_43 = arith.constant 0 : index
    %c0_44 = arith.constant 0 : index
    %86 = vector.load %arg12[%c0_42, %c0_43, %c0_44] : memref<1x64x32xbf16, #tpu.memory_space<vmem>>, vector<1x64x32xbf16>
    %87 = vector.shape_cast %86 : vector<1x64x32xbf16> to vector<64x32xbf16>
    %cst_45 = arith.constant dense<0.000000e+00> : vector<8x32xf32>
    %88 = tpu.matmul %85, %87, %cst_45 {dimension_numbers = #tpu.dot_dimension_numbers<[1], [0], [0], [1], [0, 0, 1, 1], [], []>} : vector<8x64xbf16>, vector<64x32xbf16>, vector<8x32xf32> -> vector<8x32xf32>
    %c0_46 = arith.constant 0 : index
    %c0_47 = arith.constant 0 : index
    %c0_48 = arith.constant 0 : index
    %89 = vector.load %arg13[%c0_46, %c0_47, %c0_48] : memref<1x1x32xf32, #tpu.memory_space<vmem>>, vector<1x1x32xf32>
    %90 = vector.shape_cast %89 : vector<1x1x32xf32> to vector<1x32xf32>
    %91 = vector.broadcast %90 : vector<1x32xf32> to vector<8x32xf32>
    %92 = arith.addf %88, %91 : vector<8x32xf32>
    %93 = arith.addf %74, %92 : vector<8x32xf32>
    %c0_49 = arith.constant 0 : index
    %c0_50 = arith.constant 0 : index
    %c0_51 = arith.constant 0 : index
    %94 = vector.load %arg14[%c0_49, %c0_50, %c0_51] : memref<1x1x32xf32, #tpu.memory_space<vmem>>, vector<1x1x32xf32>
    %95 = vector.shape_cast %94 : vector<1x1x32xf32> to vector<1x32xf32>
    %c0_52 = arith.constant 0 : index
    %c0_53 = arith.constant 0 : index
    %c0_54 = arith.constant 0 : index
    %96 = vector.load %arg15[%c0_52, %c0_53, %c0_54] : memref<1x1x32xf32, #tpu.memory_space<vmem>>, vector<1x1x32xf32>
    %97 = vector.shape_cast %96 : vector<1x1x32xf32> to vector<1x32xf32>
    %cst_55 = arith.constant dense<0.000000e+00> : vector<8xf32>
    %98 = vector.multi_reduction <add>, %93, %cst_55 [1] : vector<8x32xf32> to vector<8xf32>
    %99 = vector.shape_cast %98 : vector<8xf32> to vector<8x1xf32>
    %cst_56 = arith.constant 3.200000e+01 : f32
    %100 = vector.broadcast %cst_56 : f32 to vector<8x1xf32>
    %101 = arith.divf %99, %100 : vector<8x1xf32>
    %102 = vector.broadcast %101 : vector<8x1xf32> to vector<8x32xf32>
    %103 = arith.subf %93, %102 : vector<8x32xf32>
    %104 = arith.mulf %103, %103 : vector<8x32xf32>
    %cst_57 = arith.constant dense<0.000000e+00> : vector<8xf32>
    %105 = vector.multi_reduction <add>, %104, %cst_57 [1] : vector<8x32xf32> to vector<8xf32>
    %106 = vector.shape_cast %105 : vector<8xf32> to vector<8x1xf32>
    %cst_58 = arith.constant 3.200000e+01 : f32
    %107 = vector.broadcast %cst_58 : f32 to vector<8x1xf32>
    %108 = arith.divf %106, %107 : vector<8x1xf32>
    %109 = vector.broadcast %101 : vector<8x1xf32> to vector<8x32xf32>
    %110 = arith.subf %93, %109 : vector<8x32xf32>
    %cst_59 = arith.constant 9.99999974E-6 : f32
    %111 = vector.broadcast %cst_59 : f32 to vector<8x1xf32>
    %112 = arith.addf %108, %111 : vector<8x1xf32>
    %113 = math.rsqrt %112 : vector<8x1xf32>
    %114 = vector.broadcast %113 : vector<8x1xf32> to vector<8x32xf32>
    %115 = arith.mulf %110, %114 : vector<8x32xf32>
    %116 = vector.broadcast %95 : vector<1x32xf32> to vector<8x32xf32>
    %117 = arith.mulf %115, %116 : vector<8x32xf32>
    %118 = vector.broadcast %97 : vector<1x32xf32> to vector<8x32xf32>
    %119 = arith.addf %117, %118 : vector<8x32xf32>
    %c0_60 = arith.constant 0 : index
    %c0_61 = arith.constant 0 : index
    %c0_62 = arith.constant 0 : index
    %120 = vector.load %arg16[%c0_60, %c0_61, %c0_62] : memref<1x8x32xf32, #tpu.memory_space<vmem>>, vector<1x8x32xf32>
    %121 = vector.shape_cast %120 : vector<1x8x32xf32> to vector<8x32xf32>
    %122 = vector.shape_cast %119 : vector<8x32xf32> to vector<1x8x32xf32>
    tpu.vector_store %arg16[%c0_60, %c0_61, %c0_62], %122 {strides = array<i32>} : memref<1x8x32xf32, #tpu.memory_space<vmem>>, vector<1x8x32xf32>,
    return
  }
  func.func @transform_0(%arg0: i32, %arg1: i32) -> (i32, i32, i32) {
    %c0_i32 = arith.constant 0 : i32
    %c0_i32_0 = arith.constant 0 : i32
    %c0_i32_1 = arith.constant 0 : i32
    return %arg0, %c0_i32, %c0_i32_0 : i32, i32, i32
  }
  func.func @transform_1(%arg0: i32, %arg1: i32) -> (i32, i32, i32) {
    %c0_i32 = arith.constant 0 : i32
    %c0_i32_0 = arith.constant 0 : i32
    %c0_i32_1 = arith.constant 0 : i32
    return %arg0, %c0_i32, %c0_i32_0 : i32, i32, i32
  }
  func.func @transform_2(%arg0: i32, %arg1: i32) -> (i32, i32, i32) {
    %c0_i32 = arith.constant 0 : i32
    %c0_i32_0 = arith.constant 0 : i32
    %c0_i32_1 = arith.constant 0 : i32
    return %arg1, %c0_i32, %c0_i32_0 : i32, i32, i32
  }
  func.func @transform_3(%arg0: i32, %arg1: i32) -> (i32, i32, i32) {
    %c0_i32 = arith.constant 0 : i32
    %c0_i32_0 = arith.constant 0 : i32
    %c0_i32_1 = arith.constant 0 : i32
    return %arg1, %c0_i32, %c0_i32_0 : i32, i32, i32
  }
  func.func @transform_4(%arg0: i32, %arg1: i32) -> (i32, i32, i32) {
    %c0_i32 = arith.constant 0 : i32
    %c0_i32_0 = arith.constant 0 : i32
    %c0_i32_1 = arith.constant 0 : i32
    return %arg1, %c0_i32, %c0_i32_0 : i32, i32, i32
  }
  func.func @transform_5(%arg0: i32, %arg1: i32) -> (i32, i32, i32) {
    %c0_i32 = arith.constant 0 : i32
    %c0_i32_0 = arith.constant 0 : i32
    %c0_i32_1 = arith.constant 0 : i32
    return %arg1, %c0_i32, %c0_i32_0 : i32, i32, i32
  }
  func.func @transform_6(%arg0: i32, %arg1: i32) -> (i32, i32, i32) {
    %c0_i32 = arith.constant 0 : i32
    %c0_i32_0 = arith.constant 0 : i32
    %c0_i32_1 = arith.constant 0 : i32
    return %arg1, %c0_i32, %c0_i32_0 : i32, i32, i32
  }
  func.func @transform_7(%arg0: i32, %arg1: i32) -> (i32, i32, i32) {
    %c0_i32 = arith.constant 0 : i32
    %c0_i32_0 = arith.constant 0 : i32
    %c0_i32_1 = arith.constant 0 : i32
    return %arg1, %c0_i32, %c0_i32_0 : i32, i32, i32
  }
  func.func @transform_8(%arg0: i32, %arg1: i32) -> (i32, i32, i32) {
    %c0_i32 = arith.constant 0 : i32
    %c0_i32_0 = arith.constant 0 : i32
    %c0_i32_1 = arith.constant 0 : i32
    return %arg1, %c0_i32, %c0_i32_0 : i32, i32, i32
  }
  func.func @transform_9(%arg0: i32, %arg1: i32) -> (i32, i32, i32) {
    %c0_i32 = arith.constant 0 : i32
    %c0_i32_0 = arith.constant 0 : i32
    %c0_i32_1 = arith.constant 0 : i32
    return %arg1, %c0_i32, %c0_i32_0 : i32, i32, i32
  }
  func.func @transform_10(%arg0: i32, %arg1: i32) -> (i32, i32, i32) {
    %c0_i32 = arith.constant 0 : i32
    %c0_i32_0 = arith.constant 0 : i32
    %c0_i32_1 = arith.constant 0 : i32
    return %arg1, %c0_i32, %c0_i32_0 : i32, i32, i32
  }
  func.func @transform_11(%arg0: i32, %arg1: i32) -> (i32, i32, i32) {
    %c0_i32 = arith.constant 0 : i32
    %c0_i32_0 = arith.constant 0 : i32
    %c0_i32_1 = arith.constant 0 : i32
    return %arg1, %c0_i32, %c0_i32_0 : i32, i32, i32
  }
  func.func @transform_12(%arg0: i32, %arg1: i32) -> (i32, i32, i32) {
    %c0_i32 = arith.constant 0 : i32
    %c0_i32_0 = arith.constant 0 : i32
    %c0_i32_1 = arith.constant 0 : i32
    return %arg1, %c0_i32, %c0_i32_0 : i32, i32, i32
  }
  func.func @transform_13(%arg0: i32, %arg1: i32) -> (i32, i32, i32) {
    %c0_i32 = arith.constant 0 : i32
    %c0_i32_0 = arith.constant 0 : i32
    %c0_i32_1 = arith.constant 0 : i32
    return %arg1, %c0_i32, %c0_i32_0 : i32, i32, i32
  }
  func.func @transform_14(%arg0: i32, %arg1: i32) -> (i32, i32, i32) {
    %c0_i32 = arith.constant 0 : i32
    %c0_i32_0 = arith.constant 0 : i32
    %c0_i32_1 = arith.constant 0 : i32
    return %arg0, %c0_i32, %c0_i32_0 : i32, i32, i32
  }
}

</mosaic_0001>

<llo_original>
// kernel: tpu_custom_call.1
$region0: #{tpu_custom_call.1}
  #allocation0 [shape = 'u32[]', space=smem, size = 0x4, offset = 0x4, fixed_abs, tag = 'smem constant byte address 0x4 - core index']
  #allocation1 [shape = 'u32[72,128]{1,0:T(1,128)}', space=vmem, size = 0x9000, scoped, tag = 'internal scratch']
  %s0 = inlined_call_operand.hbm [shape: f32[2,8,32], index: 0, kind: input, shape index: {}]
  %s1 = inlined_call_operand.hbm [shape: f32[2,1,8], index: 1, kind: input, shape index: {}]
  %s2 = inlined_call_operand.vmem [shape: bf16[2,32,96], index: 2, kind: input, shape index: {}]
  %s3 = inlined_call_operand.hbm [shape: f32[2,1,96], index: 3, kind: input, shape index: {}]
  %s4 = inlined_call_operand.vmem [shape: bf16[2,32,32], index: 4, kind: input, shape index: {}]
  %s5 = inlined_call_operand.vmem [shape: f32[2,1,32], index: 5, kind: input, shape index: {}]
  %s6 = inlined_call_operand.vmem [shape: f32[2,1,32], index: 6, kind: input, shape index: {}]
  %s7 = inlined_call_operand.hbm [shape: f32[2,1,32], index: 7, kind: input, shape index: {}]
  %s8 = inlined_call_operand.vmem [shape: bf16[2,32,64], index: 8, kind: input, shape index: {}]
  %s9 = inlined_call_operand.vmem [shape: f32[2,1,64], index: 9, kind: input, shape index: {}]
  %s10 = inlined_call_operand.vmem [shape: bf16[2,64,32], index: 10, kind: input, shape index: {}]
  %s11 = inlined_call_operand.vmem [shape: f32[2,1,32], index: 11, kind: input, shape index: {}]
  %s12 = inlined_call_operand.vmem [shape: f32[2,1,32], index: 12, kind: input, shape index: {}]
  %s13 = inlined_call_operand.hbm [shape: f32[2,1,32], index: 13, kind: input, shape index: {}]
  %s14 = inlined_call_operand.hbm [shape: f32[2,8,32], index: 14, kind: output, shape index: {}]
  %s15 = sld [smem:[#allocation0]]
  $region113: #{tpu_custom_call.1} parent=0
    _
  %s17 = ssub.s32 1, %s15
  %s18 = scalar_select 0, %s17, %s15
  $region1: #{tpu_custom_call.1} parent=0
    #allocation2 [shape = 'u8[8192]{0}', space=vmem, size = 0x2000, scoped, tag = 'input window, operand 0']
    #allocation3 [shape = 's32[2]{0}', space=sflag, size = 0x8, scoped, tag = 'scoped memory for tpu_custom_call.1']
    #allocation4 [shape = 's32[2]{0}', space=sflag, size = 0x8, scoped, tag = 'scoped memory for tpu_custom_call.1']
    #allocation5 [shape = 'u8[1024]{0}', space=vmem, size = 0x400, scoped, tag = 'input window, operand 1']
    #allocation6 [shape = 's32[2]{0}', space=sflag, size = 0x8, scoped, tag = 'scoped memory for tpu_custom_call.1']
    #allocation7 [shape = 'u8[1024]{0}', space=vmem, size = 0x400, scoped, tag = 'input window, operand 3']
    #allocation8 [shape = 'u8[1024]{0}', space=vmem, size = 0x400, scoped, tag = 'input window, operand 7']
    #allocation9 [shape = 's32[2]{0}', space=sflag, size = 0x8, scoped, tag = 'scoped memory for tpu_custom_call.1']
    #allocation10 [shape = 'u8[1024]{0}', space=vmem, size = 0x400, scoped, tag = 'input window, operand 13']
    #allocation11 [shape = 'u8[8192]{0}', space=vmem, size = 0x2000, scoped, tag = 'output window, operand 0']
    %19 = vsyncpa [#allocation3], 0
    %s20 = scalar_lea.sflag [#allocation3], 1
    %21 = vsyncpa %s20, 0
    %22 = vsyncpa [#allocation6], 0
    %s23 = scalar_lea.sflag [#allocation6], 1
    %24 = vsyncpa %s23, 0
    %25 = vsyncpa [#allocation9], 0
    %s26 = scalar_lea.sflag [#allocation9], 1
    %27 = vsyncpa %s26, 0
    %28 = vsyncpa [#allocation4], 0
    %s29 = scalar_lea.sflag [#allocation4], 1
    %30 = vsyncpa %s29, 0
    loop: start=0, step=1, limit=6
    $region2: #{tpu_custom_call.1} parent=1 // loop_pre_header
      _
    $region3: #{tpu_custom_call.1} parent=1 // loop_header
      %s32 = sphi 0, %s36
      %p33 = scmp.ge.s32.totalorder %s32, 6
      %s39 = sphi 0, %s51
      %s40 = sphi 0, %s47
      %s41 = sphi 0, %s39
      %s42 = sphi 0, %s40
      %s43 = sphi 0, %s41
      %s44 = sphi 0, %s42
      %s54 = sphi 0, %s56
      %s57 = sphi 0, %s54
      %s58 = sphi 0, %s57
      %s74 = sphi 0, %s58
      %s80 = sphi 0, %s82
      %s83 = sphi 0, %s80
      %s84 = sphi 0, %s83
      %s100 = sphi 0, %s84
      %s106 = sphi 0, %s108
      %s109 = sphi 0, %s106
      %s110 = sphi 0, %s109
      %s126 = sphi 0, %s110
      %s132 = sphi 0, %s134
      %s135 = sphi 0, %s132
      %s136 = sphi 0, %s135
      %s152 = sphi 0, %s136
      %s158 = sphi 0, %s160
      %s161 = sphi 0, %s158
      %s162 = sphi 0, %s161
      %s178 = sphi 0, %s162
      %s184 = sphi 0, %s186
      %s187 = sphi 0, %s184
      %s188 = sphi 0, %s187
      %s204 = sphi 0, %s188
      %s210 = sphi 0, %s212
      %s213 = sphi 0, %s210
      %s214 = sphi 0, %s213
      %s230 = sphi 0, %s214
      %s236 = sphi 0, %s238
      %s239 = sphi 0, %s236
      %s240 = sphi 0, %s239
      %s256 = sphi 0, %s240
      %s262 = sphi 0, %s264
      %s265 = sphi 0, %s262
      %s266 = sphi 0, %s265
      %s282 = sphi 0, %s266
      %s288 = sphi 0, %s290
      %s291 = sphi 0, %s288
      %s292 = sphi 0, %s291
      %s308 = sphi 0, %s292
      %s314 = sphi 0, %s316
      %s317 = sphi 0, %s314
      %s318 = sphi 0, %s317
      %s334 = sphi 0, %s318
      %s340 = sphi 0, %s342
      %s343 = sphi 0, %s340
      %s344 = sphi 0, %s343
      %s360 = sphi 0, %s344
      %s366 = sphi 0, %s368
      %s369 = sphi 0, %s366
      %s370 = sphi 0, %s369
      %s386 = sphi 0, %s370
      %s392 = sphi 0, %s394
      %s395 = sphi 0, %s392
      %s396 = sphi 0, %s395
      %s412 = sphi 0, %s396
      %s418 = sphi 0, %s420
      %s421 = sphi 0, %s418
      %s422 = sphi 0, %s421
      %s438 = sphi 0, %s422
    $region4: #{tpu_custom_call.1} parent=1 // loop_header_branch
      %35 = sbr.rel (%p33) target = $region8
    $region5: #{tpu_custom_call.1} parent=1 // loop_body
      %s37 = ssub.s32 %s32, 1
      %s38 = ssub.s32 %s32, 2
      %s45 = sadd.s32 1, %s40
      %p46 = scmp.ge.s32.totalorder %s45, 2
      %s47 = scalar_select %p46, 0, %s45
      %s48 = sadd.s32 1, %s39
      %s49 = scalar_select %p46, %s48, %s39
      %p50 = scmp.ge.s32.totalorder %s49, 2
      %s51 = scalar_select %p50, 0, %s49
      %s52 = ssub.s32 %s39, %s51
      %p53 = scmp.eq.s32.totalorder %s52, 0
      %s55 = sadd.s32 %s54, 1
      %s56 = scalar_select %p53, %s54, %s55
      %p59 = pneg %p53
      %p60 = scmp.eq.s32.totalorder %s32, 3
      %p61 = por %p59, %p60
      %p62 = scmp.ne.s32.totalorder %s54, %s57
      %p63 = scmp.eq.s32.totalorder %s32, 0
      %p64 = por %p62, %p63
      %p65 = scmp.ne.s32.totalorder %s54, %s57
      %p66 = scmp.eq.s32.totalorder %s37, 3
      %p67 = por %p65, %p66
      %p68 = scmp.ne.s32.totalorder %s57, %s58
      %p69 = scmp.eq.s32.totalorder %s37, 0
      %p70 = por %p68, %p69
      %p71 = scmp.ne.s32.totalorder %s57, %s58
      %p72 = scmp.eq.s32.totalorder %s38, 3
      %p73 = por %p71, %p72
      %p75 = scmp.ne.s32.totalorder %s58, %s74
      %p76 = scmp.eq.s32.totalorder %s38, 0
      %p77 = por %p75, %p76
      %s78 = ssub.s32 %s39, %s51
      %p79 = scmp.eq.s32.totalorder %s78, 0
      %s81 = sadd.s32 %s80, 1
      %s82 = scalar_select %p79, %s80, %s81
      %p85 = pneg %p79
      %p86 = scmp.eq.s32.totalorder %s32, 3
      %p87 = por %p85, %p86
      %p88 = scmp.ne.s32.totalorder %s80, %s83
      %p89 = scmp.eq.s32.totalorder %s32, 0
      %p90 = por %p88, %p89
      %p91 = scmp.ne.s32.totalorder %s80, %s83
      %p92 = scmp.eq.s32.totalorder %s37, 3
      %p93 = por %p91, %p92
      %p94 = scmp.ne.s32.totalorder %s83, %s84
      %p95 = scmp.eq.s32.totalorder %s37, 0
      %p96 = por %p94, %p95
      %p97 = scmp.ne.s32.totalorder %s83, %s84
      %p98 = scmp.eq.s32.totalorder %s38, 3
      %p99 = por %p97, %p98
      %p101 = scmp.ne.s32.totalorder %s84, %s100
      %p102 = scmp.eq.s32.totalorder %s38, 0
      %p103 = por %p101, %p102
      %s104 = ssub.s32 %s40, %s47
      %p105 = scmp.eq.s32.totalorder %s104, 0
      %s107 = sadd.s32 %s106, 1
      %s108 = scalar_select %p105, %s106, %s107
      %p111 = pneg %p105
      %p112 = scmp.eq.s32.totalorder %s32, 3
      %p113 = por %p111, %p112
      %p114 = scmp.ne.s32.totalorder %s106, %s109
      %p115 = scmp.eq.s32.totalorder %s32, 0
      %p116 = por %p114, %p115
      %p117 = scmp.ne.s32.totalorder %s106, %s109
      %p118 = scmp.eq.s32.totalorder %s37, 3
      %p119 = por %p117, %p118
      %p120 = scmp.ne.s32.totalorder %s109, %s110
      %p121 = scmp.eq.s32.totalorder %s37, 0
      %p122 = por %p120, %p121
      %p123 = scmp.ne.s32.totalorder %s109, %s110
      %p124 = scmp.eq.s32.totalorder %s38, 3
      %p125 = por %p123, %p124
      %p127 = scmp.ne.s32.totalorder %s110, %s126
      %p128 = scmp.eq.s32.totalorder %s38, 0
      %p129 = por %p127, %p128
      %s130 = ssub.s32 %s40, %s47
      %p131 = scmp.eq.s32.totalorder %s130, 0
      %s133 = sadd.s32 %s132, 1
      %s134 = scalar_select %p131, %s132, %s133
      %p137 = pneg %p131
      %p138 = scmp.eq.s32.totalorder %s32, 3
      %p139 = por %p137, %p138
      %p140 = scmp.ne.s32.totalorder %s132, %s135
      %p141 = scmp.eq.s32.totalorder %s32, 0
      %p142 = por %p140, %p141
      %p143 = scmp.ne.s32.totalorder %s132, %s135
      %p144 = scmp.eq.s32.totalorder %s37, 3
      %p145 = por %p143, %p144
      %p146 = scmp.ne.s32.totalorder %s135, %s136
      %p147 = scmp.eq.s32.totalorder %s37, 0
      %p148 = por %p146, %p147
      %p149 = scmp.ne.s32.totalorder %s135, %s136
      %p150 = scmp.eq.s32.totalorder %s38, 3
      %p151 = por %p149, %p150
      %p153 = scmp.ne.s32.totalorder %s136, %s152
      %p154 = scmp.eq.s32.totalorder %s38, 0
      %p155 = por %p153, %p154
      %s156 = ssub.s32 %s40, %s47
      %p157 = scmp.eq.s32.totalorder %s156, 0
      %s159 = sadd.s32 %s158, 1
      %s160 = scalar_select %p157, %s158, %s159
      %p163 = pneg %p157
      %p164 = scmp.eq.s32.totalorder %s32, 3
      %p165 = por %p163, %p164
      %p166 = scmp.ne.s32.totalorder %s158, %s161
      %p167 = scmp.eq.s32.totalorder %s32, 0
      %p168 = por %p166, %p167
      %p169 = scmp.ne.s32.totalorder %s158, %s161
      %p170 = scmp.eq.s32.totalorder %s37, 3
      %p171 = por %p169, %p170
      %p172 = scmp.ne.s32.totalorder %s161, %s162
      %p173 = scmp.eq.s32.totalorder %s37, 0
      %p174 = por %p172, %p173
      %p175 = scmp.ne.s32.totalorder %s161, %s162
      %p176 = scmp.eq.s32.totalorder %s38, 3
      %p177 = por %p175, %p176
      %p179 = scmp.ne.s32.totalorder %s162, %s178
      %p180 = scmp.eq.s32.totalorder %s38, 0
      %p181 = por %p179, %p180
      %s182 = ssub.s32 %s40, %s47
      %p183 = scmp.eq.s32.totalorder %s182, 0
      %s185 = sadd.s32 %s184, 1
      %s186 = scalar_select %p183, %s184, %s185
      %p189 = pneg %p183
      %p190 = scmp.eq.s32.totalorder %s32, 3
      %p191 = por %p189, %p190
      %p192 = scmp.ne.s32.totalorder %s184, %s187
      %p193 = scmp.eq.s32.totalorder %s32, 0
      %p194 = por %p192, %p193
      %p195 = scmp.ne.s32.totalorder %s184, %s187
      %p196 = scmp.eq.s32.totalorder %s37, 3
      %p197 = por %p195, %p196
      %p198 = scmp.ne.s32.totalorder %s187, %s188
      %p199 = scmp.eq.s32.totalorder %s37, 0
      %p200 = por %p198, %p199
      %p201 = scmp.ne.s32.totalorder %s187, %s188
      %p202 = scmp.eq.s32.totalorder %s38, 3
      %p203 = por %p201, %p202
      %p205 = scmp.ne.s32.totalorder %s188, %s204
      %p206 = scmp.eq.s32.totalorder %s38, 0
      %p207 = por %p205, %p206
      %s208 = ssub.s32 %s40, %s47
      %p209 = scmp.eq.s32.totalorder %s208, 0
      %s211 = sadd.s32 %s210, 1
      %s212 = scalar_select %p209, %s210, %s211
      %p215 = pneg %p209
      %p216 = scmp.eq.s32.totalorder %s32, 3
      %p217 = por %p215, %p216
      %p218 = scmp.ne.s32.totalorder %s210, %s213
      %p219 = scmp.eq.s32.totalorder %s32, 0
      %p220 = por %p218, %p219
      %p221 = scmp.ne.s32.totalorder %s210, %s213
      %p222 = scmp.eq.s32.totalorder %s37, 3
      %p223 = por %p221, %p222
      %p224 = scmp.ne.s32.totalorder %s213, %s214
      %p225 = scmp.eq.s32.totalorder %s37, 0
      %p226 = por %p224, %p225
      %p227 = scmp.ne.s32.totalorder %s213, %s214
      %p228 = scmp.eq.s32.totalorder %s38, 3
      %p229 = por %p227, %p228
      %p231 = scmp.ne.s32.totalorder %s214, %s230
      %p232 = scmp.eq.s32.totalorder %s38, 0
      %p233 = por %p231, %p232
      %s234 = ssub.s32 %s40, %s47
      %p235 = scmp.eq.s32.totalorder %s234, 0
      %s237 = sadd.s32 %s236, 1
      %s238 = scalar_select %p235, %s236, %s237
      %p241 = pneg %p235
      %p242 = scmp.eq.s32.totalorder %s32, 3
      %p243 = por %p241, %p242
      %p244 = scmp.ne.s32.totalorder %s236, %s239
      %p245 = scmp.eq.s32.totalorder %s32, 0
      %p246 = por %p244, %p245
      %p247 = scmp.ne.s32.totalorder %s236, %s239
      %p248 = scmp.eq.s32.totalorder %s37, 3
      %p249 = por %p247, %p248
      %p250 = scmp.ne.s32.totalorder %s239, %s240
      %p251 = scmp.eq.s32.totalorder %s37, 0
      %p252 = por %p250, %p251
      %p253 = scmp.ne.s32.totalorder %s239, %s240
      %p254 = scmp.eq.s32.totalorder %s38, 3
      %p255 = por %p253, %p254
      %p257 = scmp.ne.s32.totalorder %s240, %s256
      %p258 = scmp.eq.s32.totalorder %s38, 0
      %p259 = por %p257, %p258
      %s260 = ssub.s32 %s40, %s47
      %p261 = scmp.eq.s32.totalorder %s260, 0
      %s263 = sadd.s32 %s262, 1
      %s264 = scalar_select %p261, %s262, %s263
      %p267 = pneg %p261
      %p268 = scmp.eq.s32.totalorder %s32, 3
      %p269 = por %p267, %p268
      %p270 = scmp.ne.s32.totalorder %s262, %s265
      %p271 = scmp.eq.s32.totalorder %s32, 0
      %p272 = por %p270, %p271
      %p273 = scmp.ne.s32.totalorder %s262, %s265
      %p274 = scmp.eq.s32.totalorder %s37, 3
      %p275 = por %p273, %p274
      %p276 = scmp.ne.s32.totalorder %s265, %s266
      %p277 = scmp.eq.s32.totalorder %s37, 0
      %p278 = por %p276, %p277
      %p279 = scmp.ne.s32.totalorder %s265, %s266
      %p280 = scmp.eq.s32.totalorder %s38, 3
      %p281 = por %p279, %p280
      %p283 = scmp.ne.s32.totalorder %s266, %s282
      %p284 = scmp.eq.s32.totalorder %s38, 0
      %p285 = por %p283, %p284
      %s286 = ssub.s32 %s40, %s47
      %p287 = scmp.eq.s32.totalorder %s286, 0
      %s289 = sadd.s32 %s288, 1
      %s290 = scalar_select %p287, %s288, %s289
      %p293 = pneg %p287
      %p294 = scmp.eq.s32.totalorder %s32, 3
      %p295 = por %p293, %p294
      %p296 = scmp.ne.s32.totalorder %s288, %s291
      %p297 = scmp.eq.s32.totalorder %s32, 0
      %p298 = por %p296, %p297
      %p299 = scmp.ne.s32.totalorder %s288, %s291
      %p300 = scmp.eq.s32.totalorder %s37, 3
      %p301 = por %p299, %p300
      %p302 = scmp.ne.s32.totalorder %s291, %s292
      %p303 = scmp.eq.s32.totalorder %s37, 0
      %p304 = por %p302, %p303
      %p305 = scmp.ne.s32.totalorder %s291, %s292
      %p306 = scmp.eq.s32.totalorder %s38, 3
      %p307 = por %p305, %p306
      %p309 = scmp.ne.s32.totalorder %s292, %s308
      %p310 = scmp.eq.s32.totalorder %s38, 0
      %p311 = por %p309, %p310
      %s312 = ssub.s32 %s40, %s47
      %p313 = scmp.eq.s32.totalorder %s312, 0
      %s315 = sadd.s32 %s314, 1
      %s316 = scalar_select %p313, %s314, %s315
      %p319 = pneg %p313
      %p320 = scmp.eq.s32.totalorder %s32, 3
      %p321 = por %p319, %p320
      %p322 = scmp.ne.s32.totalorder %s314, %s317
      %p323 = scmp.eq.s32.totalorder %s32, 0
      %p324 = por %p322, %p323
      %p325 = scmp.ne.s32.totalorder %s314, %s317
      %p326 = scmp.eq.s32.totalorder %s37, 3
      %p327 = por %p325, %p326
      %p328 = scmp.ne.s32.totalorder %s317, %s318
      %p329 = scmp.eq.s32.totalorder %s37, 0
      %p330 = por %p328, %p329
      %p331 = scmp.ne.s32.totalorder %s317, %s318
      %p332 = scmp.eq.s32.totalorder %s38, 3
      %p333 = por %p331, %p332
      %p335 = scmp.ne.s32.totalorder %s318, %s334
      %p336 = scmp.eq.s32.totalorder %s38, 0
      %p337 = por %p335, %p336
      %s338 = ssub.s32 %s40, %s47
      %p339 = scmp.eq.s32.totalorder %s338, 0
      %s341 = sadd.s32 %s340, 1
      %s342 = scalar_select %p339, %s340, %s341
      %p345 = pneg %p339
      %p346 = scmp.eq.s32.totalorder %s32, 3
      %p347 = por %p345, %p346
      %p348 = scmp.ne.s32.totalorder %s340, %s343
      %p349 = scmp.eq.s32.totalorder %s32, 0
      %p350 = por %p348, %p349
      %p351 = scmp.ne.s32.totalorder %s340, %s343
      %p352 = scmp.eq.s32.totalorder %s37, 3
      %p353 = por %p351, %p352
      %p354 = scmp.ne.s32.totalorder %s343, %s344
      %p355 = scmp.eq.s32.totalorder %s37, 0
      %p356 = por %p354, %p355
      %p357 = scmp.ne.s32.totalorder %s343, %s344
      %p358 = scmp.eq.s32.totalorder %s38, 3
      %p359 = por %p357, %p358
      %p361 = scmp.ne.s32.totalorder %s344, %s360
      %p362 = scmp.eq.s32.totalorder %s38, 0
      %p363 = por %p361, %p362
      %s364 = ssub.s32 %s40, %s47
      %p365 = scmp.eq.s32.totalorder %s364, 0
      %s367 = sadd.s32 %s366, 1
      %s368 = scalar_select %p365, %s366, %s367
      %p371 = pneg %p365
      %p372 = scmp.eq.s32.totalorder %s32, 3
      %p373 = por %p371, %p372
      %p374 = scmp.ne.s32.totalorder %s366, %s369
      %p375 = scmp.eq.s32.totalorder %s32, 0
      %p376 = por %p374, %p375
      %p377 = scmp.ne.s32.totalorder %s366, %s369
      %p378 = scmp.eq.s32.totalorder %s37, 3
      %p379 = por %p377, %p378
      %p380 = scmp.ne.s32.totalorder %s369, %s370
      %p381 = scmp.eq.s32.totalorder %s37, 0
      %p382 = por %p380, %p381
      %p383 = scmp.ne.s32.totalorder %s369, %s370
      %p384 = scmp.eq.s32.totalorder %s38, 3
      %p385 = por %p383, %p384
      %p387 = scmp.ne.s32.totalorder %s370, %s386
      %p388 = scmp.eq.s32.totalorder %s38, 0
      %p389 = por %p387, %p388
      %s390 = ssub.s32 %s40, %s47
      %p391 = scmp.eq.s32.totalorder %s390, 0
      %s393 = sadd.s32 %s392, 1
      %s394 = scalar_select %p391, %s392, %s393
      %p397 = pneg %p391
      %p398 = scmp.eq.s32.totalorder %s32, 3
      %p399 = por %p397, %p398
      %p400 = scmp.ne.s32.totalorder %s392, %s395
      %p401 = scmp.eq.s32.totalorder %s32, 0
      %p402 = por %p400, %p401
      %p403 = scmp.ne.s32.totalorder %s392, %s395
      %p404 = scmp.eq.s32.totalorder %s37, 3
      %p405 = por %p403, %p404
      %p406 = scmp.ne.s32.totalorder %s395, %s396
      %p407 = scmp.eq.s32.totalorder %s37, 0
      %p408 = por %p406, %p407
      %p409 = scmp.ne.s32.totalorder %s395, %s396
      %p410 = scmp.eq.s32.totalorder %s38, 3
      %p411 = por %p409, %p410
      %p413 = scmp.ne.s32.totalorder %s396, %s412
      %p414 = scmp.eq.s32.totalorder %s38, 0
      %p415 = por %p413, %p414
      %s416 = ssub.s32 %s39, %s51
      %p417 = scmp.eq.s32.totalorder %s416, 0
      %s419 = sadd.s32 %s418, 1
      %s420 = scalar_select %p417, %s418, %s419
      %p423 = pneg %p417
      %p424 = scmp.eq.s32.totalorder %s32, 3
      %p425 = por %p423, %p424
      %p426 = scmp.ne.s32.totalorder %s418, %s421
      %p427 = scmp.eq.s32.totalorder %s32, 0
      %p428 = por %p426, %p427
      %p429 = scmp.ne.s32.totalorder %s418, %s421
      %p430 = scmp.eq.s32.totalorder %s37, 3
      %p431 = por %p429, %p430
      %p432 = scmp.ne.s32.totalorder %s421, %s422
      %p433 = scmp.eq.s32.totalorder %s37, 0
      %p434 = por %p432, %p433
      %p435 = scmp.ne.s32.totalorder %s421, %s422
      %p436 = scmp.eq.s32.totalorder %s38, 3
      %p437 = por %p435, %p436
      %p439 = scmp.ne.s32.totalorder %s422, %s438
      %p440 = scmp.eq.s32.totalorder %s38, 0
      %p441 = por %p439, %p440
      %p442 = scmp.le.s32.totalorder 1, %s32
      %p443 = scmp.lt.s32.totalorder %s32, 5
      %p444 = pnand %p442, %p443
      %p445 = pneg %p444
      // Predicated region
      $region9: #{tpu_custom_call.1} parent=5 // pred_check
        _
      $region10: #{tpu_custom_call.1} parent=5 // pred_check_branch
        %447 = sbr.rel (%p444) target = $region12
      $region11: #{tpu_custom_call.1} parent=5 // pred_region
        %s448 = ssub.s32 %s32, 1
      $region12: #{tpu_custom_call.1} parent=5 // pred_fallthru
        _
      %p449 = scmp.lt.s32.totalorder %s32, 4
      // Predicated region
      $region13: #{tpu_custom_call.1} parent=5 // pred_check
        %p450 = pneg %p449
      $region14: #{tpu_custom_call.1} parent=5 // pred_check_branch
        %452 = sbr.rel (%p450) target = $region16
      $region15: #{tpu_custom_call.1} parent=5 // pred_region
        // Predicated region
        $region17: #{tpu_custom_call.1} parent=15 // pred_check
          %p453 = pneg %p64
        $region18: #{tpu_custom_call.1} parent=15 // pred_check_branch
          %455 = sbr.rel (%p453) target = $region20
        $region19: #{tpu_custom_call.1} parent=15 // pred_region
          %s456 = sand.u32 %s54, 1
          %s457 = scalar_lea.sflag [#allocation3], %s456
          %s458 = sand.u32 %s54, 1
          %s459 = smul.addr %s458, 8
          %s460 = scalar_lea.vmem [#allocation2], %s459
          %462 = vsyncadd %s457, 0
          %s463 = smul.addr %s39, 8
          %s464 = scalar_lea.hbm %s0, %s463
          %s466 = sshll.u32 %s464, 4
          %s467 = int_to_ptr.hbm [resolvable:$true] %s466
          %s468 = sshll.u32 %s460, 4
          %s469 = int_to_ptr.vmem [resolvable:$true] %s468
          %471 = dma.hbm_to_vmem [thread:$0]  %s467, 128, %s469, %s457
        $region20: #{tpu_custom_call.1} parent=15 // pred_fallthru
          _
        // Predicated region
        $region21: #{tpu_custom_call.1} parent=15 // pred_check
          %p472 = pneg %p90
        $region22: #{tpu_custom_call.1} parent=15 // pred_check_branch
          %474 = sbr.rel (%p472) target = $region24
        $region23: #{tpu_custom_call.1} parent=15 // pred_region
          %s475 = sand.u32 %s32, 1
          %s476 = scalar_lea.sflag [#allocation6], %s475
          %s477 = sand.u32 %s80, 1
          %s478 = scalar_lea.vmem [#allocation5], %s477
          %480 = vsyncadd %s476, 0
          %s481 = scalar_lea.hbm %s1, %s39
          %s483 = sshll.u32 %s481, 4
          %s484 = int_to_ptr.hbm [resolvable:$true] %s483
          %s485 = sshll.u32 %s478, 4
          %s486 = int_to_ptr.vmem [resolvable:$true] %s485
          %488 = dma.hbm_to_vmem [thread:$0]  %s484, 16, %s486, %s476
        $region24: #{tpu_custom_call.1} parent=15 // pred_fallthru
          _
        // Predicated region
        $region25: #{tpu_custom_call.1} parent=15 // pred_check
          %p489 = pneg %p116
        $region26: #{tpu_custom_call.1} parent=15 // pred_check_branch
          %491 = sbr.rel (%p489) target = $region28
        $region27: #{tpu_custom_call.1} parent=15 // pred_region
          %p492 = scmp.lt.s32.totalorder %s40, 1
          %s493 = scalar_select %p492, %s40, 1
          %s494 = smul.addr %s493, 4
          %s495 = smul.addr %s494, 4
          %s496 = scalar_lea.vmem %s2, %s495
        $region28: #{tpu_custom_call.1} parent=15 // pred_fallthru
          _
        // Predicated region
        $region29: #{tpu_custom_call.1} parent=15 // pred_check
          %p497 = pneg %p142
        $region30: #{tpu_custom_call.1} parent=15 // pred_check_branch
          %499 = sbr.rel (%p497) target = $region32
        $region31: #{tpu_custom_call.1} parent=15 // pred_region
          %s500 = sand.u32 %s32, 1
          %s501 = scalar_lea.sflag [#allocation6], %s500
          %s502 = sand.u32 %s132, 1
          %s503 = scalar_lea.vmem [#allocation7], %s502
          %505 = vsyncadd %s501, 0
          %s506 = scalar_lea.hbm %s3, %s40
          %s508 = sshll.u32 %s506, 4
          %s509 = int_to_ptr.hbm [resolvable:$true] %s508
          %s510 = sshll.u32 %s503, 4
          %s511 = int_to_ptr.vmem [resolvable:$true] %s510
          %513 = dma.hbm_to_vmem [thread:$0]  %s509, 16, %s511, %s501
        $region32: #{tpu_custom_call.1} parent=15 // pred_fallthru
          _
        // Predicated region
        $region33: #{tpu_custom_call.1} parent=15 // pred_check
          %p514 = pneg %p168
        $region34: #{tpu_custom_call.1} parent=15 // pred_check_branch
          %516 = sbr.rel (%p514) target = $region36
        $region35: #{tpu_custom_call.1} parent=15 // pred_region
          %p517 = scmp.lt.s32.totalorder %s40, 1
          %s518 = scalar_select %p517, %s40, 1
          %s519 = smul.addr %s518, 4
          %s520 = smul.addr %s519, 4
          %s521 = scalar_lea.vmem %s4, %s520
        $region36: #{tpu_custom_call.1} parent=15 // pred_fallthru
          _
        // Predicated region
        $region37: #{tpu_custom_call.1} parent=15 // pred_check
          %p522 = pneg %p194
        $region38: #{tpu_custom_call.1} parent=15 // pred_check_branch
          %524 = sbr.rel (%p522) target = $region40
        $region39: #{tpu_custom_call.1} parent=15 // pred_region
          %p525 = scmp.lt.s32.totalorder %s40, 1
          %s526 = scalar_select %p525, %s40, 1
          %s527 = scalar_lea.vmem %s5, %s526
        $region40: #{tpu_custom_call.1} parent=15 // pred_fallthru
          _
        // Predicated region
        $region41: #{tpu_custom_call.1} parent=15 // pred_check
          %p528 = pneg %p220
        $region42: #{tpu_custom_call.1} parent=15 // pred_check_branch
          %530 = sbr.rel (%p528) target = $region44
        $region43: #{tpu_custom_call.1} parent=15 // pred_region
          %p531 = scmp.lt.s32.totalorder %s40, 1
          %s532 = scalar_select %p531, %s40, 1
          %s533 = scalar_lea.vmem %s6, %s532
        $region44: #{tpu_custom_call.1} parent=15 // pred_fallthru
          _
        // Predicated region
        $region45: #{tpu_custom_call.1} parent=15 // pred_check
          %p534 = pneg %p246
        $region46: #{tpu_custom_call.1} parent=15 // pred_check_branch
          %536 = sbr.rel (%p534) target = $region48
        $region47: #{tpu_custom_call.1} parent=15 // pred_region
          %s537 = sand.u32 %s32, 1
          %s538 = scalar_lea.sflag [#allocation9], %s537
          %s539 = sand.u32 %s236, 1
          %s540 = scalar_lea.vmem [#allocation8], %s539
          %542 = vsyncadd %s538, 0
          %s543 = scalar_lea.hbm %s7, %s40
          %s545 = sshll.u32 %s543, 4
          %s546 = int_to_ptr.hbm [resolvable:$true] %s545
          %s547 = sshll.u32 %s540, 4
          %s548 = int_to_ptr.vmem [resolvable:$true] %s547
          %550 = dma.hbm_to_vmem [thread:$0]  %s546, 16, %s548, %s538
        $region48: #{tpu_custom_call.1} parent=15 // pred_fallthru
          _
        // Predicated region
        $region49: #{tpu_custom_call.1} parent=15 // pred_check
          %p551 = pneg %p272
        $region50: #{tpu_custom_call.1} parent=15 // pred_check_branch
          %553 = sbr.rel (%p551) target = $region52
        $region51: #{tpu_custom_call.1} parent=15 // pred_region
          %p554 = scmp.lt.s32.totalorder %s40, 1
          %s555 = scalar_select %p554, %s40, 1
          %s556 = smul.addr %s555, 4
          %s557 = smul.addr %s556, 4
          %s558 = scalar_lea.vmem %s8, %s557
        $region52: #{tpu_custom_call.1} parent=15 // pred_fallthru
          _
        // Predicated region
        $region53: #{tpu_custom_call.1} parent=15 // pred_check
          %p559 = pneg %p298
        $region54: #{tpu_custom_call.1} parent=15 // pred_check_branch
          %561 = sbr.rel (%p559) target = $region56
        $region55: #{tpu_custom_call.1} parent=15 // pred_region
          %p562 = scmp.lt.s32.totalorder %s40, 1
          %s563 = scalar_select %p562, %s40, 1
          %s564 = scalar_lea.vmem %s9, %s563
        $region56: #{tpu_custom_call.1} parent=15 // pred_fallthru
          _
        // Predicated region
        $region57: #{tpu_custom_call.1} parent=15 // pred_check
          %p565 = pneg %p324
        $region58: #{tpu_custom_call.1} parent=15 // pred_check_branch
          %567 = sbr.rel (%p565) target = $region60
        $region59: #{tpu_custom_call.1} parent=15 // pred_region
          %p568 = scmp.lt.s32.totalorder %s40, 1
          %s569 = scalar_select %p568, %s40, 1
          %s570 = smul.addr %s569, 8
          %s571 = smul.addr %s570, 4
          %s572 = scalar_lea.vmem %s10, %s571
        $region60: #{tpu_custom_call.1} parent=15 // pred_fallthru
          _
        // Predicated region
        $region61: #{tpu_custom_call.1} parent=15 // pred_check
          %p573 = pneg %p350
        $region62: #{tpu_custom_call.1} parent=15 // pred_check_branch
          %575 = sbr.rel (%p573) target = $region64
        $region63: #{tpu_custom_call.1} parent=15 // pred_region
          %p576 = scmp.lt.s32.totalorder %s40, 1
          %s577 = scalar_select %p576, %s40, 1
          %s578 = scalar_lea.vmem %s11, %s577
        $region64: #{tpu_custom_call.1} parent=15 // pred_fallthru
          _
        // Predicated region
        $region65: #{tpu_custom_call.1} parent=15 // pred_check
          %p579 = pneg %p376
        $region66: #{tpu_custom_call.1} parent=15 // pred_check_branch
          %581 = sbr.rel (%p579) target = $region68
        $region67: #{tpu_custom_call.1} parent=15 // pred_region
          %p582 = scmp.lt.s32.totalorder %s40, 1
          %s583 = scalar_select %p582, %s40, 1
          %s584 = scalar_lea.vmem %s12, %s583
        $region68: #{tpu_custom_call.1} parent=15 // pred_fallthru
          _
        // Predicated region
        $region69: #{tpu_custom_call.1} parent=15 // pred_check
          %p585 = pneg %p402
        $region70: #{tpu_custom_call.1} parent=15 // pred_check_branch
          %587 = sbr.rel (%p585) target = $region72
        $region71: #{tpu_custom_call.1} parent=15 // pred_region
          %s588 = sand.u32 %s32, 1
          %s589 = scalar_lea.sflag [#allocation9], %s588
          %s590 = sand.u32 %s392, 1
          %s591 = scalar_lea.vmem [#allocation10], %s590
          %593 = vsyncadd %s589, 0
          %s594 = scalar_lea.hbm %s13, %s40
          %s596 = sshll.u32 %s594, 4
          %s597 = int_to_ptr.hbm [resolvable:$true] %s596
          %s598 = sshll.u32 %s591, 4
          %s599 = int_to_ptr.vmem [resolvable:$true] %s598
          %601 = dma.hbm_to_vmem [thread:$0]  %s597, 16, %s599, %s589
        $region72: #{tpu_custom_call.1} parent=15 // pred_fallthru
          _
      $region16: #{tpu_custom_call.1} parent=5 // pred_fallthru
        _
      %p602 = scmp.le.s32.totalorder 1, %s32
      %p603 = scmp.lt.s32.totalorder %s32, 5
      %p604 = pnand %p602, %p603
      %p605 = pneg %p604
      // Predicated region
      $region73: #{tpu_custom_call.1} parent=5 // pred_check
        _
      $region74: #{tpu_custom_call.1} parent=5 // pred_check_branch
        %607 = sbr.rel (%p604) target = $region76
      $region75: #{tpu_custom_call.1} parent=5 // pred_region
        %s608 = ssub.s32 %s32, 1
        %s609 = sand.u32 %s57, 1
        %s610 = scalar_lea.sflag [#allocation3], %s609
        %s611 = sand.u32 %s57, 1
        %s612 = smul.addr %s611, 8
        %s613 = scalar_lea.vmem [#allocation2], %s612
        // Predicated region
        $region77: #{tpu_custom_call.1} parent=75 // pred_check
          %p614 = pneg %p70
        $region78: #{tpu_custom_call.1} parent=75 // pred_check_branch
          %616 = sbr.rel (%p614) target = $region80
        $region79: #{tpu_custom_call.1} parent=75 // pred_region
          %618 = dma.done %s610, 128
        $region80: #{tpu_custom_call.1} parent=75 // pred_fallthru
          _
        %s619 = sand.u32 %s37, 1
        %s620 = scalar_lea.sflag [#allocation6], %s619
        %s621 = sand.u32 %s83, 1
        %s622 = scalar_lea.vmem [#allocation5], %s621
        // Predicated region
        $region81: #{tpu_custom_call.1} parent=75 // pred_check
          %p623 = pneg %p96
        $region82: #{tpu_custom_call.1} parent=75 // pred_check_branch
          %625 = sbr.rel (%p623) target = $region84
        $region83: #{tpu_custom_call.1} parent=75 // pred_region
          %627 = dma.done %s620, 16
        $region84: #{tpu_custom_call.1} parent=75 // pred_fallthru
          _
        %s628 = sand.u32 %s37, 1
        %s629 = scalar_lea.sflag [#allocation6], %s628
        %s630 = sand.u32 %s135, 1
        %s631 = scalar_lea.vmem [#allocation7], %s630
        // Predicated region
        $region85: #{tpu_custom_call.1} parent=75 // pred_check
          %p632 = pneg %p148
        $region86: #{tpu_custom_call.1} parent=75 // pred_check_branch
          %634 = sbr.rel (%p632) target = $region88
        $region87: #{tpu_custom_call.1} parent=75 // pred_region
          %636 = dma.done %s629, 16
        $region88: #{tpu_custom_call.1} parent=75 // pred_fallthru
          _
        %s637 = sand.u32 %s37, 1
        %s638 = scalar_lea.sflag [#allocation9], %s637
        %s639 = sand.u32 %s239, 1
        %s640 = scalar_lea.vmem [#allocation8], %s639
        // Predicated region
        $region89: #{tpu_custom_call.1} parent=75 // pred_check
          %p641 = pneg %p252
        $region90: #{tpu_custom_call.1} parent=75 // pred_check_branch
          %643 = sbr.rel (%p641) target = $region92
        $region91: #{tpu_custom_call.1} parent=75 // pred_region
          %645 = dma.done %s638, 16
        $region92: #{tpu_custom_call.1} parent=75 // pred_fallthru
          _
        %s646 = sand.u32 %s37, 1
        %s647 = scalar_lea.sflag [#allocation9], %s646
        %s648 = sand.u32 %s395, 1
        %s649 = scalar_lea.vmem [#allocation10], %s648
        // Predicated region
        $region93: #{tpu_custom_call.1} parent=75 // pred_check
          %p650 = pneg %p408
        $region94: #{tpu_custom_call.1} parent=75 // pred_check_branch
          %652 = sbr.rel (%p650) target = $region96
        $region95: #{tpu_custom_call.1} parent=75 // pred_region
          %654 = dma.done %s647, 16
        $region96: #{tpu_custom_call.1} parent=75 // pred_fallthru
          _
        %s655 = sand.u32 %s57, 1
        %s656 = scalar_lea.sflag [#allocation3], %s655
        %s657 = sand.u32 %s57, 1
        %s658 = smul.addr %s657, 8
        %s659 = scalar_lea.vmem [#allocation2], %s658
        %p660 = pneg %p70
        %p661 = pneg %p67
        %s662 = sand.u32 %s37, 1
        %s663 = scalar_lea.sflag [#allocation6], %s662
        %s664 = sand.u32 %s83, 1
        %s665 = scalar_lea.vmem [#allocation5], %s664
        %p666 = pneg %p96
        %p667 = pneg %p93
        %p668 = scmp.lt.s32.totalorder %s42, 1
        %s669 = scalar_select %p668, %s42, 1
        %s670 = smul.addr %s669, 4
        %s671 = smul.addr %s670, 4
        %s672 = scalar_lea.vmem %s2, %s671
        %p673 = pneg %p122
        %p674 = pneg %p119
        %s675 = sand.u32 %s37, 1
        %s676 = scalar_lea.sflag [#allocation6], %s675
        %s677 = sand.u32 %s135, 1
        %s678 = scalar_lea.vmem [#allocation7], %s677
        %p679 = pneg %p148
        %p680 = pneg %p145
        %p681 = scmp.lt.s32.totalorder %s42, 1
        %s682 = scalar_select %p681, %s42, 1
        %s683 = smul.addr %s682, 4
        %s684 = smul.addr %s683, 4
        %s685 = scalar_lea.vmem %s4, %s684
        %p686 = pneg %p174
        %p687 = pneg %p171
        %p688 = scmp.lt.s32.totalorder %s42, 1
        %s689 = scalar_select %p688, %s42, 1
        %s690 = scalar_lea.vmem %s5, %s689
        %p691 = pneg %p200
        %p692 = pneg %p197
        %p693 = scmp.lt.s32.totalorder %s42, 1
        %s694 = scalar_select %p693, %s42, 1
        %s695 = scalar_lea.vmem %s6, %s694
        %p696 = pneg %p226
        %p697 = pneg %p223
        %s698 = sand.u32 %s37, 1
        %s699 = scalar_lea.sflag [#allocation9], %s698
        %s700 = sand.u32 %s239, 1
        %s701 = scalar_lea.vmem [#allocation8], %s700
        %p702 = pneg %p252
        %p703 = pneg %p249
        %p704 = scmp.lt.s32.totalorder %s42, 1
        %s705 = scalar_select %p704, %s42, 1
        %s706 = smul.addr %s705, 4
        %s707 = smul.addr %s706, 4
        %s708 = scalar_lea.vmem %s8, %s707
        %p709 = pneg %p278
        %p710 = pneg %p275
        %p711 = scmp.lt.s32.totalorder %s42, 1
        %s712 = scalar_select %p711, %s42, 1
        %s713 = scalar_lea.vmem %s9, %s712
        %p714 = pneg %p304
        %p715 = pneg %p301
        %p716 = scmp.lt.s32.totalorder %s42, 1
        %s717 = scalar_select %p716, %s42, 1
        %s718 = smul.addr %s717, 8
        %s719 = smul.addr %s718, 4
        %s720 = scalar_lea.vmem %s10, %s719
        %p721 = pneg %p330
        %p722 = pneg %p327
        %p723 = scmp.lt.s32.totalorder %s42, 1
        %s724 = scalar_select %p723, %s42, 1
        %s725 = scalar_lea.vmem %s11, %s724
        %p726 = pneg %p356
        %p727 = pneg %p353
        %p728 = scmp.lt.s32.totalorder %s42, 1
        %s729 = scalar_select %p728, %s42, 1
        %s730 = scalar_lea.vmem %s12, %s729
        %p731 = pneg %p382
        %p732 = pneg %p379
        %s733 = sand.u32 %s37, 1
        %s734 = scalar_lea.sflag [#allocation9], %s733
        %s735 = sand.u32 %s395, 1
        %s736 = scalar_lea.vmem [#allocation10], %s735
        %p737 = pneg %p408
        %p738 = pneg %p405
        %p739 = pneg %p434
        %p740 = pneg %p431
        %s741 = sand.u32 %s421, 1
        %s742 = scalar_lea.sflag [#allocation4], %s741
        %s743 = sand.u32 %s421, 1
        %s744 = smul.addr %s743, 8
        %s745 = scalar_lea.vmem [#allocation11], %s744
        %p746 = scmp.lt.s32.totalorder %s42, 1
        %s747 = scalar_select %p746, %s42, 1
        %s748 = smul.addr %s747, 4
        %s749 = smul.addr %s748, 4
        %s750 = scalar_lea.vmem %s2, %s749
        %p751 = scmp.lt.s32.totalorder %s42, 1
        %s752 = scalar_select %p751, %s42, 1
        %s753 = smul.addr %s752, 4
        %s754 = smul.addr %s753, 4
        %s755 = scalar_lea.vmem %s4, %s754
        %p756 = scmp.lt.s32.totalorder %s42, 1
        %s757 = scalar_select %p756, %s42, 1
        %s758 = scalar_lea.vmem %s5, %s757
        %p759 = scmp.lt.s32.totalorder %s42, 1
        %s760 = scalar_select %p759, %s42, 1
        %s761 = scalar_lea.vmem %s6, %s760
        %p762 = scmp.lt.s32.totalorder %s42, 1
        %s763 = scalar_select %p762, %s42, 1
        %s764 = smul.addr %s763, 4
        %s765 = smul.addr %s764, 4
        %s766 = scalar_lea.vmem %s8, %s765
        %p767 = scmp.lt.s32.totalorder %s42, 1
        %s768 = scalar_select %p767, %s42, 1
        %s769 = scalar_lea.vmem %s9, %s768
        %p770 = scmp.lt.s32.totalorder %s42, 1
        %s771 = scalar_select %p770, %s42, 1
        %s772 = smul.addr %s771, 8
        %s773 = smul.addr %s772, 4
        %s774 = scalar_lea.vmem %s10, %s773
        %p775 = scmp.lt.s32.totalorder %s42, 1
        %s776 = scalar_select %p775, %s42, 1
        %s777 = scalar_lea.vmem %s11, %s776
        %p778 = scmp.lt.s32.totalorder %s42, 1
        %s779 = scalar_select %p778, %s42, 1
        %s780 = scalar_lea.vmem %s12, %s779
        %p782 = scmp.eq.s32.totalorder %s42, 0
        // Predicated region
        $region97: #{tpu_custom_call.1} parent=75 // pred_check
          %p783 = pneg %p782
        $region98: #{tpu_custom_call.1} parent=75 // pred_check_branch
          %785 = sbr.rel (%p783) target = $region100
        $region99: #{tpu_custom_call.1} parent=75 // pred_region
          %v786 = vld [vmem:[%s613] sm:$0xff]
          %vm787 = vcmask 261120
          %788 = vst.msk [vmem:[%s745] sm:$0xff] %vm787, %v786
        $region100: #{tpu_custom_call.1} parent=75 // pred_fallthru
          _
        %v789 = vld [vmem:[%s745] sm:$0xff]
        %v790 = vpack.c.bf16 %v789, %v789
        %v791 = vld [vmem:[%s750] sm:$0xf]
        %v792 = vld [vmem:[%s750 + $0x4] sm:$0xf]
        %v793 = vld [vmem:[%s750 + $0x8] sm:$0xf]
        %v794 = vld [vmem:[%s750 + $0xc] sm:$0xf]
        %v795 = vld [vmem:[%s631] sm:$0x1]
        %v797 = vperm.slane %v795, 0
        %v803 = vunpack.c.l.b16 %v791
        %v804 = vunpack.c.l.b16 %v792
        %v805 = vunpack.c.l.b16 %v793
        %v806 = vunpack.c.l.b16 %v794
        %v807 = vpack.c.b16 %v804, %v803
        %v808 = vpack.c.b16 %v806, %v805
        %vm811 = vcmask 261120
        %v813 = vsel %vm811, %v790, 0
        %815 = vmatpush.bf16.msra.mxu0 0
        %816 = vmatpush.bf16.msra.mxu0 0
        %817 = vmatpush.bf16.msra.mxu0 0
        %818 = vmatpush.bf16.msra.mxu0 0
        %819 = vmatpush.bf16.msra.mxu0 0
        %820 = vmatpush.bf16.msra.mxu0 0
        %821 = vmatpush.bf16.msra.mxu0 %v808
        %822 = vmatpush.bf16.msra.mxu0 %v807
        %823 = vmatmul.bf16.gmra.mxu0 %v813
        %v824 = vpop.f32.mrf.mxu0
        %v825 = vadd.f32 %v797, %v824
        %v826 = vpop.f32.mrf.mxu0
        %827 = vdwg.mxu0
        %v828 = vpack.c.bf16 %v825, %v825
        %830 = vrot.lane.b32.xlu0 %v828, 120
        %v831 = vpop.permute.xlu0 %830
        %832 = vrot.lane.b32.xlu0 %v828, 112
        %v833 = vpop.permute.xlu0 %832
        %834 = vrot.lane.b32.xlu0 %v828, 104
        %v835 = vpop.permute.xlu0 %834
        %v836 = vld [vmem:[%s622] sm:$0x1]
        %v838 = vperm.slane %v836, 0
        %v840 = vunpack.c.l.b16 %v828
        %v841 = vunpack.c.l.b16 %v831
        %v842 = vunpack.c.l.b16 %v833
        %v843 = vunpack.c.l.b16 %v835
        %v844 = vpack.c.b16 %v840, %v840
        %v845 = vpack.c.b16 %v841, %v841
        %v846 = vpack.c.b16 %v842, %v842
        %v847 = vpack.c.b16 %v843, %v843
        %848 = vrot.lane.b32.xlu0 %v844, 96
        %v849 = vpop.permute.xlu0 %848
        %850 = vrot.lane.b32.xlu0 %v845, 96
        %v851 = vpop.permute.xlu0 %850
        %852 = vrot.lane.b32.xlu0 %v846, 96
        %v853 = vpop.permute.xlu0 %852
        %854 = vrot.lane.b32.xlu0 %v847, 96
        %v855 = vpop.permute.xlu0 %854
        %860 = vxpose.xlu0.c.b16.start [1/8] %v849, 128
        %861 = vxpose.xlu0.c.b16.cont [2/8] 0, 128
        %862 = vxpose.xlu0.c.b16.cont [3/8] 0, 128
        %863 = vxpose.xlu0.c.b16.cont [4/8] 0, 128
        %864 = vxpose.xlu0.c.b16.cont [5/8] 0, 128
        %865 = vxpose.xlu0.c.b16.cont [6/8] 0, 128
        %866 = vxpose.xlu0.c.b16.cont [7/8] 0, 128
        %867 = vxpose.xlu0.c.b16.end [8/8] 0, 128
        %v868 = vpop.trf.xlu0
        %v869 = vpop.trf.xlu0
        %v870 = vpop.trf.xlu0
        %v871 = vpop.trf.xlu0
        %v872 = vpop.trf.xlu0
        %v873 = vpop.trf.xlu0
        %v874 = vpop.trf.xlu0
        %v875 = vpop.trf.xlu0
        %876 = vxpose.xlu0.c.b16.start [1/8] %v851, 128
        %877 = vxpose.xlu0.c.b16.cont [2/8] 0, 128
        %878 = vxpose.xlu0.c.b16.cont [3/8] 0, 128
        %879 = vxpose.xlu0.c.b16.cont [4/8] 0, 128
        %880 = vxpose.xlu0.c.b16.cont [5/8] 0, 128
        %881 = vxpose.xlu0.c.b16.cont [6/8] 0, 128
        %882 = vxpose.xlu0.c.b16.cont [7/8] 0, 128
        %883 = vxpose.xlu0.c.b16.end [8/8] 0, 128
        %v884 = vpop.trf.xlu0
        %v885 = vpop.trf.xlu0
        %v886 = vpop.trf.xlu0
        %v887 = vpop.trf.xlu0
        %v888 = vpop.trf.xlu0
        %v889 = vpop.trf.xlu0
        %v890 = vpop.trf.xlu0
        %v891 = vpop.trf.xlu0
        %892 = vxpose.xlu0.c.b16.start [1/8] %v853, 128
        %893 = vxpose.xlu0.c.b16.cont [2/8] 0, 128
        %894 = vxpose.xlu0.c.b16.cont [3/8] 0, 128
        %895 = vxpose.xlu0.c.b16.cont [4/8] 0, 128
        %896 = vxpose.xlu0.c.b16.cont [5/8] 0, 128
        %897 = vxpose.xlu0.c.b16.cont [6/8] 0, 128
        %898 = vxpose.xlu0.c.b16.cont [7/8] 0, 128
        %899 = vxpose.xlu0.c.b16.end [8/8] 0, 128
        %v900 = vpop.trf.xlu0
        %v901 = vpop.trf.xlu0
        %v902 = vpop.trf.xlu0
        %v903 = vpop.trf.xlu0
        %v904 = vpop.trf.xlu0
        %v905 = vpop.trf.xlu0
        %v906 = vpop.trf.xlu0
        %v907 = vpop.trf.xlu0
        %908 = vxpose.xlu0.c.b16.start [1/8] %v855, 128
        %909 = vxpose.xlu0.c.b16.cont [2/8] 0, 128
        %910 = vxpose.xlu0.c.b16.cont [3/8] 0, 128
        %911 = vxpose.xlu0.c.b16.cont [4/8] 0, 128
        %912 = vxpose.xlu0.c.b16.cont [5/8] 0, 128
        %913 = vxpose.xlu0.c.b16.cont [6/8] 0, 128
        %914 = vxpose.xlu0.c.b16.cont [7/8] 0, 128
        %915 = vxpose.xlu0.c.b16.end [8/8] 0, 128
        %v916 = vpop.trf.xlu0
        %v917 = vpop.trf.xlu0
        %v918 = vpop.trf.xlu0
        %v919 = vpop.trf.xlu0
        %v920 = vpop.trf.xlu0
        %v921 = vpop.trf.xlu0
        %v922 = vpop.trf.xlu0
        %v923 = vpop.trf.xlu0
        %vm924 = vcmask 64512
        %v926 = vsel %vm924, %v828, 0
        %vm928 = vcmask 1043456
        %v930 = vsel %vm928, %v868, 0
        %932 = vmatpush.bf16.msra.mxu0 0
        %933 = vmatpush.bf16.msra.mxu0 0
        %934 = vmatpush.bf16.msra.mxu0 0
        %935 = vmatpush.bf16.msra.mxu0 0
        %936 = vmatpush.bf16.msra.mxu0 0
        %937 = vmatpush.bf16.msra.mxu0 0
        %938 = vmatpush.bf16.msra.mxu0 0
        %939 = vmatpush.bf16.msra.mxu0 %v930
        %940 = vmatmul.bf16.gmra.mxu0 %v926
        %v941 = vpop.f32.mrf.mxu0
        %v942 = vadd.f32 %v838, %v941
        %v943 = vpop.f32.mrf.mxu0
        %944 = vdwg.mxu0
        %v946 = vsel %vm924, %v831, 0
        %v949 = vsel %vm928, %v884, 0
        %951 = vmatpush.bf16.msra.mxu0 0
        %952 = vmatpush.bf16.msra.mxu0 0
        %953 = vmatpush.bf16.msra.mxu0 0
        %954 = vmatpush.bf16.msra.mxu0 0
        %955 = vmatpush.bf16.msra.mxu0 0
        %956 = vmatpush.bf16.msra.mxu0 0
        %957 = vmatpush.bf16.msra.mxu0 0
        %958 = vmatpush.bf16.msra.mxu0 %v949
        %959 = vmatmul.bf16.gmra.mxu0 %v946
        %v960 = vpop.f32.mrf.mxu0
        %v961 = vadd.f32 %v838, %v960
        %v962 = vpop.f32.mrf.mxu0
        %963 = vdwg.mxu0
        %v965 = vsel %vm924, %v833, 0
        %v968 = vsel %vm928, %v900, 0
        %970 = vmatpush.bf16.msra.mxu0 0
        %971 = vmatpush.bf16.msra.mxu0 0
        %972 = vmatpush.bf16.msra.mxu0 0
        %973 = vmatpush.bf16.msra.mxu0 0
        %974 = vmatpush.bf16.msra.mxu0 0
        %975 = vmatpush.bf16.msra.mxu0 0
        %976 = vmatpush.bf16.msra.mxu0 0
        %977 = vmatpush.bf16.msra.mxu0 %v968
        %978 = vmatmul.bf16.gmra.mxu0 %v965
        %v979 = vpop.f32.mrf.mxu0
        %v980 = vadd.f32 %v838, %v979
        %v981 = vpop.f32.mrf.mxu0
        %982 = vdwg.mxu0
        %v984 = vsel %vm924, %v835, 0
        %v987 = vsel %vm928, %v916, 0
        %989 = vmatpush.bf16.msra.mxu0 0
        %990 = vmatpush.bf16.msra.mxu0 0
        %991 = vmatpush.bf16.msra.mxu0 0
        %992 = vmatpush.bf16.msra.mxu0 0
        %993 = vmatpush.bf16.msra.mxu0 0
        %994 = vmatpush.bf16.msra.mxu0 0
        %995 = vmatpush.bf16.msra.mxu0 0
        %996 = vmatpush.bf16.msra.mxu0 %v987
        %997 = vmatmul.bf16.gmra.mxu0 %v984
        %v998 = vpop.f32.mrf.mxu0
        %v999 = vadd.f32 %v838, %v998
        %v1000 = vpop.f32.mrf.mxu0
        %1001 = vdwg.mxu0
        %v1002 = vsel %vm924, %v942, -inf
        %1003 = vmax.xlane.f32.xlu0 %v1002
        %v1004 = vpop.xlane.xlu0 %1003
        %v1005 = vsel %vm924, %v961, -inf
        %1006 = vmax.xlane.f32.xlu0 %v1005
        %v1007 = vpop.xlane.xlu0 %1006
        %v1008 = vsel %vm924, %v980, -inf
        %1009 = vmax.xlane.f32.xlu0 %v1008
        %v1010 = vpop.xlane.xlu0 %1009
        %v1011 = vsel %vm924, %v999, -inf
        %1012 = vmax.xlane.f32.xlu0 %v1011
        %v1013 = vpop.xlane.xlu0 %1012
        %v1014 = vsub.f32 %v942, %v1004
        %v1015 = vsub.f32 %v961, %v1007
        %v1016 = vsub.f32 %v980, %v1010
        %v1017 = vsub.f32 %v999, %v1013
        %v1018 = vmul.f32 %v1014, 1.442695
        %v1019 = vpow.pop %v1018
        %v1020 = vmul.f32 %v1015, 1.442695
        %v1021 = vpow.pop %v1020
        %v1022 = vmul.f32 %v1016, 1.442695
        %v1023 = vpow.pop %v1022
        %v1024 = vmul.f32 %v1017, 1.442695
        %v1025 = vpow.pop %v1024
        %v1026 = vsel %vm924, %v1019, 0.0
        %1027 = vadd.xlane.f32.xlu0 %v1026
        %v1028 = vpop.xlane.xlu0 %1027
        %v1029 = vsel %vm924, %v1021, 0.0
        %1030 = vadd.xlane.f32.xlu0 %v1029
        %v1031 = vpop.xlane.xlu0 %1030
        %v1032 = vsel %vm924, %v1023, 0.0
        %1033 = vadd.xlane.f32.xlu0 %v1032
        %v1034 = vpop.xlane.xlu0 %1033
        %v1035 = vsel %vm924, %v1025, 0.0
        %1036 = vadd.xlane.f32.xlu0 %v1035
        %v1037 = vpop.xlane.xlu0 %1036
        %v1038 = vrcp.pop %v1028
        %v1039 = vrcp.pop %v1031
        %v1040 = vrcp.pop %v1034
        %v1041 = vrcp.pop %v1037
        %v1042 = vmul.f32 %v1019, %v1038
        %v1043 = vmul.f32 %v1021, %v1039
        %v1044 = vmul.f32 %v1023, %v1040
        %v1045 = vmul.f32 %v1025, %v1041
        %v1046 = vpack.c.bf16 %v1042, %v1042
        %v1047 = vpack.c.bf16 %v1043, %v1043
        %v1048 = vpack.c.bf16 %v1044, %v1044
        %v1049 = vpack.c.bf16 %v1045, %v1045
        %1050 = vrot.lane.b32.xlu0 %v844, 64
        %v1051 = vpop.permute.xlu0 %1050
        %v1053 = vsel %vm924, %v1046, 0
        %v1056 = vsel %vm928, %v1051, 0
        %1058 = vmatpush.bf16.msra.mxu0 0
        %1059 = vmatpush.bf16.msra.mxu0 0
        %1060 = vmatpush.bf16.msra.mxu0 0
        %1061 = vmatpush.bf16.msra.mxu0 0
        %1062 = vmatpush.bf16.msra.mxu0 0
        %1063 = vmatpush.bf16.msra.mxu0 0
        %1064 = vmatpush.bf16.msra.mxu0 0
        %1065 = vmatpush.bf16.msra.mxu0 %v1056
        %1066 = vmatmul.bf16.gmra.mxu0 %v1053
        %v1067 = vpop.f32.mrf.mxu0
        %v1068 = vadd.f32 0.0, %v1067
        %v1069 = vpop.f32.mrf.mxu0
        %1070 = vdwg.mxu0
        %1071 = vrot.lane.b32.xlu0 %v845, 64
        %v1072 = vpop.permute.xlu0 %1071
        %v1074 = vsel %vm924, %v1047, 0
        %v1077 = vsel %vm928, %v1072, 0
        %1079 = vmatpush.bf16.msra.mxu0 0
        %1080 = vmatpush.bf16.msra.mxu0 0
        %1081 = vmatpush.bf16.msra.mxu0 0
        %1082 = vmatpush.bf16.msra.mxu0 0
        %1083 = vmatpush.bf16.msra.mxu0 0
        %1084 = vmatpush.bf16.msra.mxu0 0
        %1085 = vmatpush.bf16.msra.mxu0 0
        %1086 = vmatpush.bf16.msra.mxu0 %v1077
        %1087 = vmatmul.bf16.gmra.mxu0 %v1074
        %v1088 = vpop.f32.mrf.mxu0
        %v1089 = vadd.f32 0.0, %v1088
        %v1090 = vpop.f32.mrf.mxu0
        %1091 = vdwg.mxu0
        %1092 = vrot.lane.b32.xlu0 %v846, 64
        %v1093 = vpop.permute.xlu0 %1092
        %v1095 = vsel %vm924, %v1048, 0
        %v1098 = vsel %vm928, %v1093, 0
        %1100 = vmatpush.bf16.msra.mxu0 0
        %1101 = vmatpush.bf16.msra.mxu0 0
        %1102 = vmatpush.bf16.msra.mxu0 0
        %1103 = vmatpush.bf16.msra.mxu0 0
        %1104 = vmatpush.bf16.msra.mxu0 0
        %1105 = vmatpush.bf16.msra.mxu0 0
        %1106 = vmatpush.bf16.msra.mxu0 0
        %1107 = vmatpush.bf16.msra.mxu0 %v1098
        %1108 = vmatmul.bf16.gmra.mxu0 %v1095
        %v1109 = vpop.f32.mrf.mxu0
        %v1110 = vadd.f32 0.0, %v1109
        %v1111 = vpop.f32.mrf.mxu0
        %1112 = vdwg.mxu0
        %1113 = vrot.lane.b32.xlu0 %v847, 64
        %v1114 = vpop.permute.xlu0 %1113
        %v1116 = vsel %vm924, %v1049, 0
        %v1119 = vsel %vm928, %v1114, 0
        %1121 = vmatpush.bf16.msra.mxu0 0
        %1122 = vmatpush.bf16.msra.mxu0 0
        %1123 = vmatpush.bf16.msra.mxu0 0
        %1124 = vmatpush.bf16.msra.mxu0 0
        %1125 = vmatpush.bf16.msra.mxu0 0
        %1126 = vmatpush.bf16.msra.mxu0 0
        %1127 = vmatpush.bf16.msra.mxu0 0
        %1128 = vmatpush.bf16.msra.mxu0 %v1119
        %1129 = vmatmul.bf16.gmra.mxu0 %v1116
        %v1130 = vpop.f32.mrf.mxu0
        %v1131 = vadd.f32 0.0, %v1130
        %v1132 = vpop.f32.mrf.mxu0
        %1133 = vdwg.mxu0
        %v1134 = vrot.slane %v1110, 4
        %vm1135 = vcmask 1047556
        %v1136 = vsel %vm1135, %v1134, %v1068
        %v1137 = vrot.slane %v1068, 4
        %v1138 = vsel %vm1135, %v1110, %v1137
        %v1140 = vunpack.c.l.s4 1983009808
        %v1141 = vunpack.c.0.s8 %v1140
        %v1142 = vperm.slane %v1136, %v1141
        %v1144 = vunpack.c.l.s4 1983009808
        %v1145 = vunpack.c.0.s8 %v1144
        %v1146 = vperm.slane %v1138, %v1145
        %v1147 = vrot.slane %v1131, 4
        %v1148 = vsel %vm1135, %v1147, %v1089
        %v1149 = vrot.slane %v1089, 4
        %v1150 = vsel %vm1135, %v1131, %v1149
        %v1152 = vunpack.c.l.s4 1983009808
        %v1153 = vunpack.c.0.s8 %v1152
        %v1154 = vperm.slane %v1148, %v1153
        %v1156 = vunpack.c.l.s4 1983009808
        %v1157 = vunpack.c.0.s8 %v1156
        %v1158 = vperm.slane %v1150, %v1157
        %v1159 = vrot.slane %v1154, 4
        %v1160 = vsel %vm1135, %v1159, %v1142
        %v1161 = vrot.slane %v1142, 4
        %v1162 = vsel %vm1135, %v1154, %v1161
        %v1164 = vunpack.c.l.s4 1934713408
        %v1165 = vunpack.c.0.s8 %v1164
        %v1166 = vperm.slane %v1160, %v1165
        %v1168 = vunpack.c.l.s4 1934713408
        %v1169 = vunpack.c.0.s8 %v1168
        %v1170 = vperm.slane %v1162, %v1169
        %v1171 = vrot.slane %v1158, 4
        %v1172 = vsel %vm1135, %v1171, %v1146
        %v1173 = vrot.slane %v1146, 4
        %v1174 = vsel %vm1135, %v1158, %v1173
        %v1176 = vunpack.c.l.s4 1934713408
        %v1177 = vunpack.c.0.s8 %v1176
        %v1178 = vperm.slane %v1172, %v1177
        %v1180 = vunpack.c.l.s4 1934713408
        %v1181 = vunpack.c.0.s8 %v1180
        %v1182 = vperm.slane %v1174, %v1181
        %v1183 = vrot.slane %v1166, 4
        %v1184 = vsel %vm1135, 0.0, %v1183
        %v1185 = vrot.slane %v1170, 4
        %v1186 = vsel %vm1135, 0.0, %v1185
        %v1187 = vrot.slane %v1178, 4
        %v1188 = vsel %vm1135, 0.0, %v1187
        %v1189 = vrot.slane %v1182, 4
        %v1190 = vsel %vm1135, 0.0, %v1189
        %v1191 = vsel %vm1135, %v1185, %v1166
        %v1193 = vunpack.c.l.s4 1983009808
        %v1194 = vunpack.c.0.s8 %v1193
        %v1195 = vperm.slane %v1191, %v1194
        %v1196 = vrot.slane %v1186, 4
        %v1197 = vsel %vm1135, %v1196, %v1184
        %v1199 = vunpack.c.l.s4 1983009808
        %v1200 = vunpack.c.0.s8 %v1199
        %v1201 = vperm.slane %v1197, %v1200
        %v1202 = vsel %vm1135, %v1189, %v1178
        %v1204 = vunpack.c.l.s4 1983009808
        %v1205 = vunpack.c.0.s8 %v1204
        %v1206 = vperm.slane %v1202, %v1205
        %v1207 = vrot.slane %v1190, 4
        %v1208 = vsel %vm1135, %v1207, %v1188
        %v1210 = vunpack.c.l.s4 1983009808
        %v1211 = vunpack.c.0.s8 %v1210
        %v1212 = vperm.slane %v1208, %v1211
        %v1213 = vrot.slane %v1201, 4
        %v1214 = vsel %vm1135, %v1213, %v1195
        %v1215 = vrot.slane %v1195, 4
        %v1216 = vsel %vm1135, %v1201, %v1215
        %v1218 = vunpack.c.l.s4 1934713408
        %v1219 = vunpack.c.0.s8 %v1218
        %v1220 = vperm.slane %v1214, %v1219
        %v1222 = vunpack.c.l.s4 1934713408
        %v1223 = vunpack.c.0.s8 %v1222
        %v1224 = vperm.slane %v1216, %v1223
        %v1225 = vrot.slane %v1212, 4
        %v1226 = vsel %vm1135, %v1225, %v1206
        %v1227 = vrot.slane %v1206, 4
        %v1228 = vsel %vm1135, %v1212, %v1227
        %v1230 = vunpack.c.l.s4 1934713408
        %v1231 = vunpack.c.0.s8 %v1230
        %v1232 = vperm.slane %v1226, %v1231
        %v1234 = vunpack.c.l.s4 1934713408
        %v1235 = vunpack.c.0.s8 %v1234
        %v1236 = vperm.slane %v1228, %v1235
        %v1237 = vrot.slane %v1232, 4
        %v1238 = vsel %vm1135, %v1237, %v1220
        %v1239 = vrot.slane %v1220, 4
        %v1240 = vsel %vm1135, %v1232, %v1239
        %v1241 = vrot.slane %v1236, 4
        %v1242 = vsel %vm1135, %v1241, %v1224
        %v1243 = vrot.slane %v1224, 4
        %v1244 = vsel %vm1135, %v1236, %v1243
        %1246 = vrot.lane.b32.xlu0 %v1240, 8
        %v1247 = vpop.permute.xlu0 %1246
        %1250 = vrot.lane.b32.xlu0 %v1242, 16
        %v1251 = vpop.permute.xlu0 %1250
        %1254 = vrot.lane.b32.xlu0 %v1244, 24
        %v1255 = vpop.permute.xlu0 %1254
        %v1257 = vsel %vm924, %v1238, %v1247
        %vm1258 = vcmask 130048
        %v1259 = vsel %vm1258, %v1257, %v1251
        %vm1260 = vcmask 195584
        %v1261 = vsel %vm1260, %v1259, %v1255
        %v1262 = vpack.c.bf16 %v1261, %v1261
        %v1263 = vld [vmem:[%s755] sm:$0xf]
        %v1264 = vld [vmem:[%s755 + $0x4] sm:$0xf]
        %v1265 = vld [vmem:[%s755 + $0x8] sm:$0xf]
        %v1266 = vld [vmem:[%s755 + $0xc] sm:$0xf]
        %v1267 = vld [vmem:[%s758] sm:$0x1]
        %v1269 = vperm.slane %v1267, 0
        %v1275 = vunpack.c.l.b16 %v1263
        %v1276 = vunpack.c.l.b16 %v1264
        %v1277 = vunpack.c.l.b16 %v1265
        %v1278 = vunpack.c.l.b16 %v1266
        %v1279 = vpack.c.b16 %v1276, %v1275
        %v1280 = vpack.c.b16 %v1278, %v1277
        %v1284 = vsel %vm811, %v1262, 0
        %1286 = vmatpush.bf16.msra.mxu0 0
        %1287 = vmatpush.bf16.msra.mxu0 0
        %1288 = vmatpush.bf16.msra.mxu0 0
        %1289 = vmatpush.bf16.msra.mxu0 0
        %1290 = vmatpush.bf16.msra.mxu0 0
        %1291 = vmatpush.bf16.msra.mxu0 0
        %1292 = vmatpush.bf16.msra.mxu0 %v1280
        %1293 = vmatpush.bf16.msra.mxu0 %v1279
        %1294 = vmatmul.bf16.gmra.mxu0 %v1284
        %v1295 = vpop.f32.mrf.mxu0
        %v1296 = vadd.f32 %v1269, %v1295
        %v1297 = vpop.f32.mrf.mxu0
        %1298 = vdwg.mxu0
        %v1299 = vadd.f32 %v789, %v1296
        %v1300 = vld [vmem:[%s761] sm:$0x1]
        %v1301 = vld [vmem:[%s640] sm:$0x1]
        %v1302 = vsel %vm811, %v1299, 0.0
        %1303 = vadd.xlane.f32.xlu0 %v1302
        %v1304 = vpop.xlane.xlu0 %1303
        %v1305 = vrcp.pop 32.0
        %v1306 = vmul.f32 32.0, %v1305
        %v1307 = vsub.f32 1.0, %v1306
        %v1308 = vmul.f32 %v1305, %v1307
        %v1309 = vadd.f32 %v1305, %v1308
        %vm1310 = vweird.f32 %v1305
        %v1311 = vsel %vm1310, %v1305, %v1309
        %v1312 = vmul.f32 %v1304, %v1311
        %v1313 = vsub.f32 %v1299, %v1312
        %v1314 = vmul.f32 %v1313, %v1313
        %v1315 = vsel %vm811, %v1314, 0.0
        %1316 = vadd.xlane.f32.xlu0 %v1315
        %v1317 = vpop.xlane.xlu0 %1316
        %v1318 = vmul.f32 %v1317, %v1311
        %v1319 = vadd.f32 %v1318, 1e-05
        %v1320 = vrsqrt.pop %v1319
        %v1321 = vmul.f32 %v1320, %v1319
        %v1322 = vmul.f32 %v1321, %v1320
        %v1323 = vmul.f32 0.5, %v1322
        %v1324 = vsub.f32 1.5, %v1323
        %v1325 = vmul.f32 %v1320, %v1324
        %vm1326 = vweird.f32 %v1319
        %vm1327 = vweird.f32 %v1320
        %vm1328 = vmor %vm1326, %vm1327
        %v1329 = vsel %vm1328, %v1320, %v1325
        %v1330 = vmul.f32 %v1313, %v1329
        %v1332 = vperm.slane %v1300, 0
        %v1334 = vmul.f32 %v1330, %v1332
        %v1336 = vperm.slane %v1301, 0
        %v1338 = vadd.f32 %v1334, %v1336
        %v1339 = vpack.c.bf16 %v1338, %v1338
        %v1340 = vld [vmem:[%s766] sm:$0xf]
        %v1341 = vld [vmem:[%s766 + $0x4] sm:$0xf]
        %v1342 = vld [vmem:[%s766 + $0x8] sm:$0xf]
        %v1343 = vld [vmem:[%s766 + $0xc] sm:$0xf]
        %v1344 = vld [vmem:[%s769] sm:$0x1]
        %v1346 = vperm.slane %v1344, 0
        %v1352 = vunpack.c.l.b16 %v1340
        %v1353 = vunpack.c.l.b16 %v1341
        %v1354 = vunpack.c.l.b16 %v1342
        %v1355 = vunpack.c.l.b16 %v1343
        %v1356 = vpack.c.b16 %v1353, %v1352
        %v1357 = vpack.c.b16 %v1355, %v1354
        %v1361 = vsel %vm811, %v1339, 0
        %1363 = vmatpush.bf16.msra.mxu0 0
        %1364 = vmatpush.bf16.msra.mxu0 0
        %1365 = vmatpush.bf16.msra.mxu0 0
        %1366 = vmatpush.bf16.msra.mxu0 0
        %1367 = vmatpush.bf16.msra.mxu0 0
        %1368 = vmatpush.bf16.msra.mxu0 0
        %1369 = vmatpush.bf16.msra.mxu0 %v1357
        %1370 = vmatpush.bf16.msra.mxu0 %v1356
        %1371 = vmatmul.bf16.gmra.mxu0 %v1361
        %v1372 = vpop.f32.mrf.mxu0
        %v1373 = vadd.f32 %v1346, %v1372
        %v1374 = vpop.f32.mrf.mxu0
        %1375 = vdwg.mxu0
        %v1376 = vmax.f32 %v1373, 0.0
        %v1377 = vpack.c.bf16 %v1376, %v1376
        %v1378 = vld [vmem:[%s774] sm:$0xf]
        %v1379 = vld [vmem:[%s774 + $0x4] sm:$0xf]
        %v1380 = vld [vmem:[%s774 + $0x8] sm:$0xf]
        %v1381 = vld [vmem:[%s774 + $0xc] sm:$0xf]
        %v1382 = vld [vmem:[%s774 + $0x10] sm:$0xf]
        %v1383 = vld [vmem:[%s774 + $0x14] sm:$0xf]
        %v1384 = vld [vmem:[%s774 + $0x18] sm:$0xf]
        %v1385 = vld [vmem:[%s774 + $0x1c] sm:$0xf]
        %v1386 = vld [vmem:[%s777] sm:$0x1]
        %v1388 = vperm.slane %v1386, 0
        %v1398 = vunpack.c.l.b16 %v1378
        %v1399 = vunpack.c.l.b16 %v1379
        %v1400 = vunpack.c.l.b16 %v1380
        %v1401 = vunpack.c.l.b16 %v1381
        %v1402 = vunpack.c.l.b16 %v1382
        %v1403 = vunpack.c.l.b16 %v1383
        %v1404 = vunpack.c.l.b16 %v1384
        %v1405 = vunpack.c.l.b16 %v1385
        %v1406 = vpack.c.b16 %v1399, %v1398
        %v1407 = vpack.c.b16 %v1401, %v1400
        %v1408 = vpack.c.b16 %v1403, %v1402
        %v1409 = vpack.c.b16 %v1405, %v1404
        %vm1414 = vcmask 523264
        %v1416 = vsel %vm1414, %v1377, 0
        %1418 = vmatpush.bf16.msra.mxu0 0
        %1419 = vmatpush.bf16.msra.mxu0 0
        %1420 = vmatpush.bf16.msra.mxu0 0
        %1421 = vmatpush.bf16.msra.mxu0 0
        %1422 = vmatpush.bf16.msra.mxu0 %v1409
        %1423 = vmatpush.bf16.msra.mxu0 %v1408
        %1424 = vmatpush.bf16.msra.mxu0 %v1407
        %1425 = vmatpush.bf16.msra.mxu0 %v1406
        %1426 = vmatmul.bf16.gmra.mxu0 %v1416
        %v1427 = vpop.f32.mrf.mxu0
        %v1428 = vadd.f32 %v1388, %v1427
        %v1429 = vpop.f32.mrf.mxu0
        %1430 = vdwg.mxu0
        %v1431 = vadd.f32 %v1338, %v1428
        %v1432 = vld [vmem:[%s780] sm:$0x1]
        %v1433 = vld [vmem:[%s649] sm:$0x1]
        %v1434 = vsel %vm811, %v1431, 0.0
        %1435 = vadd.xlane.f32.xlu0 %v1434
        %v1436 = vpop.xlane.xlu0 %1435
        %v1437 = vmul.f32 %v1436, %v1311
        %v1438 = vsub.f32 %v1431, %v1437
        %v1439 = vmul.f32 %v1438, %v1438
        %v1440 = vsel %vm811, %v1439, 0.0
        %1441 = vadd.xlane.f32.xlu0 %v1440
        %v1442 = vpop.xlane.xlu0 %1441
        %v1443 = vmul.f32 %v1442, %v1311
        %v1444 = vadd.f32 %v1443, 1e-05
        %v1445 = vrsqrt.pop %v1444
        %v1446 = vmul.f32 %v1445, %v1444
        %v1447 = vmul.f32 %v1446, %v1445
        %v1448 = vmul.f32 0.5, %v1447
        %v1449 = vsub.f32 1.5, %v1448
        %v1450 = vmul.f32 %v1445, %v1449
        %vm1451 = vweird.f32 %v1444
        %vm1452 = vweird.f32 %v1445
        %vm1453 = vmor %vm1451, %vm1452
        %v1454 = vsel %vm1453, %v1445, %v1450
        %v1455 = vmul.f32 %v1438, %v1454
        %v1457 = vperm.slane %v1432, 0
        %v1459 = vmul.f32 %v1455, %v1457
        %v1461 = vperm.slane %v1433, 0
        %v1463 = vadd.f32 %v1459, %v1461
        %1464 = vst.msk [vmem:[%s745] sm:$0xff] %vm811, %v1463
        %s1465 = sand.u32 %s421, 1
        %s1466 = scalar_lea.sflag [#allocation4], %s1465
        %s1467 = sand.u32 %s421, 1
        %s1468 = smul.addr %s1467, 8
        %s1469 = scalar_lea.vmem [#allocation11], %s1468
        // Predicated region
        $region101: #{tpu_custom_call.1} parent=75 // pred_check
          %p1470 = pneg %p431
        $region102: #{tpu_custom_call.1} parent=75 // pred_check_branch
          %1472 = sbr.rel (%p1470) target = $region104
        $region103: #{tpu_custom_call.1} parent=75 // pred_region
          %1474 = vsyncadd %s1466, 0
          %s1475 = smul.addr %s41, 8
          %s1476 = scalar_lea.hbm %s14, %s1475
          %s1478 = sshll.u32 %s1469, 4
          %s1479 = int_to_ptr.vmem [resolvable:$true] %s1478
          %s1480 = sshll.u32 %s1476, 4
          %s1481 = int_to_ptr.hbm [resolvable:$true] %s1480
          %1483 = dma.vmem_to_hbm [thread:$0]  %s1479, 128, %s1481, %s1466
        $region104: #{tpu_custom_call.1} parent=75 // pred_fallthru
          _
      $region76: #{tpu_custom_call.1} parent=5 // pred_fallthru
        _
      %p1484 = scmp.le.s32.totalorder 2, %s32
      // Predicated region
      $region105: #{tpu_custom_call.1} parent=5 // pred_check
        %p1485 = pneg %p1484
      $region106: #{tpu_custom_call.1} parent=5 // pred_check_branch
        %1487 = sbr.rel (%p1485) target = $region108
      $region107: #{tpu_custom_call.1} parent=5 // pred_region
        %s1488 = ssub.s32 %s32, 2
        // Predicated region
        $region109: #{tpu_custom_call.1} parent=107 // pred_check
          %p1489 = pneg %p437
        $region110: #{tpu_custom_call.1} parent=107 // pred_check_branch
          %1491 = sbr.rel (%p1489) target = $region112
        $region111: #{tpu_custom_call.1} parent=107 // pred_region
          %s1492 = sand.u32 %s422, 1
          %s1493 = scalar_lea.sflag [#allocation4], %s1492
          %s1494 = sand.u32 %s422, 1
          %s1495 = smul.addr %s1494, 8
          %s1496 = scalar_lea.vmem [#allocation11], %s1495
          %1498 = dma.done %s1493, 128
        $region112: #{tpu_custom_call.1} parent=107 // pred_fallthru
          _
      $region108: #{tpu_custom_call.1} parent=5 // pred_fallthru
        _
    $region6: #{tpu_custom_call.1} parent=1 // loop_footer
      %s36 = sadd.s32 1, %s32
    $region7: #{tpu_custom_call.1} parent=1 // loop_footer_branch
      %31 = sbr.rel target = $region3
    $region8: #{tpu_custom_call.1} parent=1 // loop_exit
      _
    %1499 = vsyncpa [#allocation3], 1
    %s1500 = scalar_lea.sflag [#allocation3], 1
    %1501 = vsyncpa %s1500, 1
    %1502 = vsyncpa [#allocation6], 1
    %s1503 = scalar_lea.sflag [#allocation6], 1
    %1504 = vsyncpa %s1503, 1
    %1505 = vsyncpa [#allocation9], 1
    %s1506 = scalar_lea.sflag [#allocation9], 1
    %1507 = vsyncpa %s1506, 1
    %1508 = vsyncpa [#allocation4], 1
    %s1509 = scalar_lea.sflag [#allocation4], 1
    %1510 = vsyncpa %s1509, 1

</llo_original>
